<compile_context>
chip_gen: v7x
topology: tpu7x:2x2x1
jax: 0.10.0
libtpu: 0.0.40
codegen_flags: <defaults>
</compile_context>

<pallas_src>
import functools
from typing import NamedTuple

import jax
import jax.numpy as jnp
import numpy as np
from jax import lax
from jax.experimental import pallas as pl
from jax.experimental.pallas import tpu as pltpu

_LANE = 128


def _round_up(x, m):
    return (x + m - 1) // m * m


class FusedUnembedParams(NamedTuple):
    w: jax.Array      # (E, V_pad) bf16 fused weights (padded only at the end)
    b: jax.Array      # (1, V_pad) f32 fused bias
    layout: dict      # head name -> (offset, size) into the fused vocab axis
    v_total: int      # unpadded fused vocab size
    block_v: int      # vocab column tile (divides V_pad)


def prepare_fused_unembed(heads, *, max_block_v=2048):
    """One-time parameter prep: concatenate all heads along the vocab axis.

    Only the *total* fused vocab is padded (to the column-tile size). Per-head
    offsets stay unpadded and are recorded in `layout` for HBM-side slicing.
    Call this once at model-load time and reuse the result for every forward.
    """
    ws, bs, layout = [], [], {}
    off = 0
    for name, (w, b) in heads.items():
        v = int(w.shape[1])
        ws.append(jnp.asarray(w, jnp.float32))
        bs.append(jnp.asarray(b, jnp.float32))
        layout[name] = (off, v)
        off += v
    v_total = off

    # Column tile: lane-aligned; capping at 2048 bounds per-step VMEM on v7x.
    block_v = min(_round_up(v_total, _LANE), max_block_v)
    v_pad = _round_up(v_total, block_v)

    w_cat = jnp.concatenate(ws, axis=1)
    b_cat = jnp.concatenate(bs, axis=0)
    if v_pad != v_total:
        w_cat = jnp.pad(w_cat, ((0, 0), (0, v_pad - v_total)))
        b_cat = jnp.pad(b_cat, (0, v_pad - v_total))

    return FusedUnembedParams(
        w=w_cat.astype(jnp.bfloat16),
        b=b_cat.reshape(1, v_pad).astype(jnp.float32),
        layout=layout, v_total=v_total, block_v=block_v)


def split_heads(fused_out, params, n_notes):
    """Test / compatibility glue: materializes per-head slice copies.

    Avoid in the hot path -- prefer consuming the fused tensor + layout.
    """
    return {name: fused_out[:n_notes, off:off + v]
            for name, (off, v) in params.layout.items()}


def _vmem_limit_bytes(vmem_est):
    try:
        phys = int(pltpu.get_tpu_info().vmem_capacity_bytes)
    except Exception:
        phys = 64 * 1024 * 1024          # conservative: v7x per-TC VMEM
    cap = int(phys * 0.8)                # ~51 MiB v7x, ~102 MiB v5e/v6e
    limit = int(min(max(2 * vmem_est, 16 * 1024 * 1024), cap))
    return max(limit, int(vmem_est))     # never clamp below the requirement


def _unembed_kernel(x_ref, gamma_ref, beta_ref, w_ref, b_ref, o_ref, xn_ref,
                    *, eps):
    # LayerNorm once per row tile (f32 statistics), cached in VMEM scratch as
    # bf16 (the MXU lhs dtype) and reused for every vocab-column tile.
    @pl.when(pl.program_id(1) == 0)
    def _():
        x = x_ref[...].astype(jnp.float32)                       # (bn, E)
        mean = jnp.mean(x, axis=-1, keepdims=True)
        centered = x - mean
        var = jnp.mean(centered * centered, axis=-1, keepdims=True)
        xn = centered * lax.rsqrt(var + eps)
        xn = xn * gamma_ref[...] + beta_ref[...]                 # f32 affine
        xn_ref[...] = xn.astype(jnp.bfloat16)

    # Fused projection: bf16 x bf16 -> f32 accumulation on the MXU.
    y = jnp.dot(xn_ref[...], w_ref[...], preferred_element_type=jnp.float32)
    o_ref[...] = (y + b_ref[...]).astype(o_ref.dtype)            # (bn, bv)


def midi_unembeddings_fwd(x, gamma, beta, params, *, eps=1e-12, block_n=None,
                          out_dtype=jnp.bfloat16):
    """Fused LayerNorm + multi-head unembedding.

    x:      (n_notes, E) activations.
    gamma, beta: (E,) LayerNorm affine parameters.
    params: FusedUnembedParams from prepare_fused_unembed().
    Returns the fused, padded (n_pad, V_pad) output (out_dtype, default bf16).
    Use params.layout (or split_heads) to address individual heads.
    """
    n, e = x.shape
    out_dtype = np.dtype(out_dtype)
    v_pad = params.w.shape[1]
    block_v = params.block_v
    n_col = v_pad // block_v

    if block_n is None:
        # Keep several row steps even for short sequences so DMA overlaps
        # compute and both v7x TensorCores get work; go bigger with more rows.
        block_n = 256 if n >= 4096 else 128
    block_n = max(8, _round_up(block_n, 8))

    n_pad = _round_up(max(n, 1), block_n)
    x_in = jnp.pad(x, ((0, n_pad - n), (0, 0))) if n_pad != n else x
    grid = (n_pad // block_n, n_col)

    gamma2 = jnp.asarray(gamma, jnp.float32).reshape(1, e)
    beta2 = jnp.asarray(beta, jnp.float32).reshape(1, e)

    def build(single_buffer):
        def spec(shape, index_map, is_const):
            if single_buffer and is_const:
                return pl.BlockSpec(shape, index_map,
                                    pipeline_mode=pl.Buffered(1))
            return pl.BlockSpec(shape, index_map)

        # Weight/bias blocks are grid-constant only when there is one column.
        w_const = (n_col == 1)
        in_specs = [
            pl.BlockSpec((block_n, e), lambda i, j: (i, 0)),          # x tile
            spec((1, e), lambda i, j: (0, 0), True),                  # gamma
            spec((1, e), lambda i, j: (0, 0), True),                  # beta
            spec((e, block_v), lambda i, j: (0, j), w_const),         # W tile
            spec((1, block_v), lambda i, j: (0, j), w_const),         # b tile
        ]
        out_spec = pl.BlockSpec((block_n, block_v), lambda i, j: (i, j))

        w_bufs = 1 if (single_buffer and w_const) else 2
        vmem_est = (2 * block_n * e * x_in.dtype.itemsize           # x tiles
                    + 2 * block_n * block_v * out_dtype.itemsize    # out tiles
                    + w_bufs * (e * block_v * 2 + block_v * 4)      # W (bf16)+b
                    + 4 * e * 4                                     # gamma/beta
                    + block_n * e * 2                               # xn scratch
                    + block_n * block_v * 4                         # f32 y temp
                    + 4 * block_n * e * 4)                          # LN temps
        vmem_limit = _vmem_limit_bytes(vmem_est)

        return pl.pallas_call(
            functools.partial(_unembed_kernel, eps=eps),
            out_shape=jax.ShapeDtypeStruct((n_pad, v_pad), out_dtype),
            grid_spec=pltpu.PrefetchScalarGridSpec(
                num_scalar_prefetch=0,
                grid=grid,
                in_specs=in_specs,
                out_specs=out_spec,
                scratch_shapes=[pltpu.VMEM((block_n, e), jnp.bfloat16)],
            ),
            compiler_params=pltpu.CompilerParams(
                # Rows shard across TensorCores; columns stay "arbitrary" so
                # the per-row LayerNorm scratch caching (col == 0) is valid.
                dimension_semantics=("parallel", "arbitrary"),
                vmem_limit_bytes=vmem_limit),
        )

    try:
        return build(True)(x_in, gamma2, beta2, params.w, params.b)
    except Exception:
        # Fall back to default double buffering if Buffered(1) is rejected.
        return build(False)(x_in, gamma2, beta2, params.w, params.b)


def _init_linear(key, in_dim, out_dim, dtype=jnp.float32):
    # Deterministic PyTorch-style init: U(-1/sqrt(in), 1/sqrt(in)).
    kw, kb = jax.random.split(key)
    bound = 1.0 / (in_dim ** 0.5)
    w = jax.random.uniform(kw, (in_dim, out_dim), dtype, -bound, bound)
    b = jax.random.uniform(kb, (out_dim,), dtype, -bound, bound)
    return w, b


if __name__ == "__main__":
    # Small synthetic config (matches the module's forward semantics).
    embedding_size = 32
    vocab_sizes = {
        "onset": 24,
        "duration": 16,
        "pitch": 12,
        "velocity": 8,
        "pad": 1,          # mask_embeddings: Linear(E, 1)
    }
    layer_norm_eps = 1e-12
    n_notes = 300          # deliberately NOT a multiple of block_n

    key = jax.random.PRNGKey(0)
    keys = jax.random.split(key, 8)

    x = jax.random.normal(keys[0], (n_notes, embedding_size), jnp.float32)

    # LayerNorm params (PyTorch default: gamma=1, beta=0).
    gamma = jnp.ones((embedding_size,), jnp.float32)
    beta = jnp.zeros((embedding_size,), jnp.float32)

    # Per-head linear params (the ParameterDict + mask_embeddings).
    heads = {}
    for i, (name, size) in enumerate(vocab_sizes.items()):
        heads[name] = _init_linear(keys[1 + i], embedding_size, size)

    # One-time fused parameter prep (hoisted out of the forward pass).
    fused = prepare_fused_unembed(heads)

    out = midi_unembeddings_fwd(x, gamma, beta, fused, eps=layer_norm_eps)
    jax.block_until_ready(out)

    # Reference in plain JAX: f32 LayerNorm, then bf16-operand projection with
    # f32 accumulation (same numerics as the kernel's MXU path).
    mean = jnp.mean(x, axis=-1, keepdims=True)
    centered = x - mean
    var = jnp.mean(centered * centered, axis=-1, keepdims=True)
    xn = centered * jax.lax.rsqrt(var + layer_norm_eps) * gamma + beta
    xn_bf = xn.astype(jnp.bfloat16).astype(jnp.float32)

    head_outs = split_heads(out, fused, n_notes)   # test-only glue (copies)

    ok = True
    for name, size in vocab_sizes.items():
        w, b = heads[name]
        w_bf = w.astype(jnp.bfloat16).astype(jnp.float32)
        ref = xn_bf @ w_bf + b
        got = head_outs[name].astype(jnp.float32)
        ok &= got.shape == (n_notes, size)
        ok &= bool(jnp.allclose(got, ref, atol=3e-2, rtol=3e-2))
    assert ok, "mismatch vs reference"

    print("KERNEL_OK")
</pallas_src>

<mosaic_0001>
module attributes {stable_mosaic.version = 11 : i64} {
  func.func @_unembed_kernel(%arg0: i32, %arg1: i32, %arg2: memref<128x32xf32, #tpu.memory_space<vmem>>, %arg3: memref<1x32xf32, #tpu.memory_space<vmem>>, %arg4: memref<1x32xf32, #tpu.memory_space<vmem>>, %arg5: memref<32x128xbf16, #tpu.memory_space<vmem>>, %arg6: memref<1x128xf32, #tpu.memory_space<vmem>>, %arg7: memref<128x128xbf16, #tpu.memory_space<vmem>>, %arg8: memref<128x32xbf16, #tpu.memory_space<vmem>>) attributes {dimension_semantics = [#tpu.dimension_semantics<parallel>, #tpu.dimension_semantics<arbitrary>], iteration_bounds = array<i64: 3, 1>, scalar_prefetch = 0 : i64, scratch_operands = 1 : i64, tpu.core_type = #tpu.core_type<tc>, window_params = [{transform_indices = @transform_0, window_bounds = array<i64: 128, 32>}, {pipeline_mode = #tpu.pipeline_mode<synchronous>, transform_indices = @transform_1, window_bounds = array<i64: 1, 32>}, {pipeline_mode = #tpu.pipeline_mode<synchronous>, transform_indices = @transform_2, window_bounds = array<i64: 1, 32>}, {pipeline_mode = #tpu.pipeline_mode<synchronous>, transform_indices = @transform_3, window_bounds = array<i64: 32, 128>}, {pipeline_mode = #tpu.pipeline_mode<synchronous>, transform_indices = @transform_4, window_bounds = array<i64: 1, 128>}, {transform_indices = @transform_5, window_bounds = array<i64: 128, 128>}]} {
    %c0_i32 = arith.constant 0 : i32
    %0 = arith.cmpi eq, %arg1, %c0_i32 : i32
    %1 = arith.extui %0 : i1 to i32
    %c0_i32_0 = arith.constant 0 : i32
    %2 = arith.cmpi ne, %1, %c0_i32_0 : i32
    scf.if %2 {
      %c0_8 = arith.constant 0 : index
      %c0_9 = arith.constant 0 : index
      %11 = vector.load %arg2[%c0_8, %c0_9] : memref<128x32xf32, #tpu.memory_space<vmem>>, vector<128x32xf32>
      %cst_10 = arith.constant dense<0.000000e+00> : vector<128xf32>
      %12 = vector.multi_reduction <add>, %11, %cst_10 [1] : vector<128x32xf32> to vector<128xf32>
      %13 = vector.shape_cast %12 : vector<128xf32> to vector<128x1xf32>
      %cst_11 = arith.constant 3.200000e+01 : f32
      %14 = vector.broadcast %cst_11 : f32 to vector<128x1xf32>
      %15 = arith.divf %13, %14 : vector<128x1xf32>
      %16 = vector.broadcast %15 : vector<128x1xf32> to vector<128x32xf32>
      %17 = arith.subf %11, %16 : vector<128x32xf32>
      %18 = arith.mulf %17, %17 : vector<128x32xf32>
      %cst_12 = arith.constant dense<0.000000e+00> : vector<128xf32>
      %19 = vector.multi_reduction <add>, %18, %cst_12 [1] : vector<128x32xf32> to vector<128xf32>
      %20 = vector.shape_cast %19 : vector<128xf32> to vector<128x1xf32>
      %cst_13 = arith.constant 3.200000e+01 : f32
      %21 = vector.broadcast %cst_13 : f32 to vector<128x1xf32>
      %22 = arith.divf %20, %21 : vector<128x1xf32>
      %cst_14 = arith.constant 9.99999996E-13 : f32
      %23 = vector.broadcast %cst_14 : f32 to vector<128x1xf32>
      %24 = arith.addf %22, %23 : vector<128x1xf32>
      %25 = math.rsqrt %24 : vector<128x1xf32>
      %26 = vector.broadcast %25 : vector<128x1xf32> to vector<128x32xf32>
      %27 = arith.mulf %17, %26 : vector<128x32xf32>
      %c0_15 = arith.constant 0 : index
      %c0_16 = arith.constant 0 : index
      %28 = vector.load %arg3[%c0_15, %c0_16] : memref<1x32xf32, #tpu.memory_space<vmem>>, vector<1x32xf32>
      %29 = vector.broadcast %28 : vector<1x32xf32> to vector<128x32xf32>
      %30 = arith.mulf %27, %29 : vector<128x32xf32>
      %c0_17 = arith.constant 0 : index
      %c0_18 = arith.constant 0 : index
      %31 = vector.load %arg4[%c0_17, %c0_18] : memref<1x32xf32, #tpu.memory_space<vmem>>, vector<1x32xf32>
      %32 = vector.broadcast %31 : vector<1x32xf32> to vector<128x32xf32>
      %33 = arith.addf %30, %32 : vector<128x32xf32>
      %34 = arith.truncf %33 : vector<128x32xf32> to vector<128x32xbf16>
      %c0_19 = arith.constant 0 : index
      %c0_20 = arith.constant 0 : index
      %35 = vector.load %arg8[%c0_19, %c0_20] : memref<128x32xbf16, #tpu.memory_space<vmem>>, vector<128x32xbf16>
      tpu.vector_store %arg8[%c0_19, %c0_20], %34 {strides = array<i32>} : memref<128x32xbf16, #tpu.memory_space<vmem>>, vector<128x32xbf16>,
    } else {
    }
    %c0 = arith.constant 0 : index
    %c0_1 = arith.constant 0 : index
    %3 = vector.load %arg8[%c0, %c0_1] : memref<128x32xbf16, #tpu.memory_space<vmem>>, vector<128x32xbf16>
    %c0_2 = arith.constant 0 : index
    %c0_3 = arith.constant 0 : index
    %4 = vector.load %arg5[%c0_2, %c0_3] : memref<32x128xbf16, #tpu.memory_space<vmem>>, vector<32x128xbf16>
    %cst = arith.constant dense<0.000000e+00> : vector<128x128xf32>
    %5 = tpu.matmul %3, %4, %cst {dimension_numbers = #tpu.dot_dimension_numbers<[1], [0], [0], [1], [0, 0, 1, 1], [], []>} : vector<128x32xbf16>, vector<32x128xbf16>, vector<128x128xf32> -> vector<128x128xf32>
    %c0_4 = arith.constant 0 : index
    %c0_5 = arith.constant 0 : index
    %6 = vector.load %arg6[%c0_4, %c0_5] : memref<1x128xf32, #tpu.memory_space<vmem>>, vector<1x128xf32>
    %7 = vector.broadcast %6 : vector<1x128xf32> to vector<128x128xf32>
    %8 = arith.addf %5, %7 : vector<128x128xf32>
    %9 = arith.truncf %8 : vector<128x128xf32> to vector<128x128xbf16>
    %c0_6 = arith.constant 0 : index
    %c0_7 = arith.constant 0 : index
    %10 = vector.load %arg7[%c0_6, %c0_7] : memref<128x128xbf16, #tpu.memory_space<vmem>>, vector<128x128xbf16>
    tpu.vector_store %arg7[%c0_6, %c0_7], %9 {strides = array<i32>} : memref<128x128xbf16, #tpu.memory_space<vmem>>, vector<128x128xbf16>,
    return
  }
  func.func @transform_0(%arg0: i32, %arg1: i32) -> (i32, i32) {
    %c0_i32 = arith.constant 0 : i32
    %c0_i32_0 = arith.constant 0 : i32
    return %arg0, %c0_i32 : i32, i32
  }
  func.func @transform_1(%arg0: i32, %arg1: i32) -> (i32, i32) {
    %c0_i32 = arith.constant 0 : i32
    %c0_i32_0 = arith.constant 0 : i32
    %c0_i32_1 = arith.constant 0 : i32
    return %c0_i32, %c0_i32_0 : i32, i32
  }
  func.func @transform_2(%arg0: i32, %arg1: i32) -> (i32, i32) {
    %c0_i32 = arith.constant 0 : i32
    %c0_i32_0 = arith.constant 0 : i32
    %c0_i32_1 = arith.constant 0 : i32
    return %c0_i32, %c0_i32_0 : i32, i32
  }
  func.func @transform_3(%arg0: i32, %arg1: i32) -> (i32, i32) {
    %c0_i32 = arith.constant 0 : i32
    %c0_i32_0 = arith.constant 0 : i32
    return %c0_i32, %arg1 : i32, i32
  }
  func.func @transform_4(%arg0: i32, %arg1: i32) -> (i32, i32) {
    %c0_i32 = arith.constant 0 : i32
    %c0_i32_0 = arith.constant 0 : i32
    return %c0_i32, %arg1 : i32, i32
  }
  func.func @transform_5(%arg0: i32, %arg1: i32) -> (i32, i32) {
    %c0_i32 = arith.constant 0 : i32
    return %arg0, %arg1 : i32, i32
  }
}

module attributes {stable_mosaic.version = 11 : i64} {
  func.func @_unembed_kernel(%arg0: i32, %arg1: i32, %arg2: memref<128x32xf32, #tpu.memory_space<vmem>>, %arg3: memref<1x32xf32, #tpu.memory_space<vmem>>, %arg4: memref<1x32xf32, #tpu.memory_space<vmem>>, %arg5: memref<32x128xbf16, #tpu.memory_space<vmem>>, %arg6: memref<1x128xf32, #tpu.memory_space<vmem>>, %arg7: memref<128x128xbf16, #tpu.memory_space<vmem>>, %arg8: memref<128x32xbf16, #tpu.memory_space<vmem>>) attributes {dimension_semantics = [#tpu.dimension_semantics<parallel>, #tpu.dimension_semantics<arbitrary>], iteration_bounds = array<i64: 3, 1>, scalar_prefetch = 0 : i64, scratch_operands = 1 : i64, tpu.core_type = #tpu.core_type<tc>, window_params = [{transform_indices = @transform_0, window_bounds = array<i64: 128, 32>}, {pipeline_mode = #tpu.pipeline_mode<synchronous>, transform_indices = @transform_1, window_bounds = array<i64: 1, 32>}, {pipeline_mode = #tpu.pipeline_mode<synchronous>, transform_indices = @transform_2, window_bounds = array<i64: 1, 32>}, {transform_indices = @transform_3, window_bounds = array<i64: 32, 128>}, {transform_indices = @transform_4, window_bounds = array<i64: 1, 128>}, {transform_indices = @transform_5, window_bounds = array<i64: 128, 128>}]} {
    %c0_i32 = arith.constant 0 : i32
    %0 = arith.cmpi eq, %arg1, %c0_i32 : i32
    %1 = arith.extui %0 : i1 to i32
    %c0_i32_0 = arith.constant 0 : i32
    %2 = arith.cmpi ne, %1, %c0_i32_0 : i32
    scf.if %2 {
      %c0_8 = arith.constant 0 : index
      %c0_9 = arith.constant 0 : index
      %11 = vector.load %arg2[%c0_8, %c0_9] : memref<128x32xf32, #tpu.memory_space<vmem>>, vector<128x32xf32>
      %cst_10 = arith.constant dense<0.000000e+00> : vector<128xf32>
      %12 = vector.multi_reduction <add>, %11, %cst_10 [1] : vector<128x32xf32> to vector<128xf32>
      %13 = vector.shape_cast %12 : vector<128xf32> to vector<128x1xf32>
      %cst_11 = arith.constant 3.200000e+01 : f32
      %14 = vector.broadcast %cst_11 : f32 to vector<128x1xf32>
      %15 = arith.divf %13, %14 : vector<128x1xf32>
      %16 = vector.broadcast %15 : vector<128x1xf32> to vector<128x32xf32>
      %17 = arith.subf %11, %16 : vector<128x32xf32>
      %18 = arith.mulf %17, %17 : vector<128x32xf32>
      %cst_12 = arith.constant dense<0.000000e+00> : vector<128xf32>
      %19 = vector.multi_reduction <add>, %18, %cst_12 [1] : vector<128x32xf32> to vector<128xf32>
      %20 = vector.shape_cast %19 : vector<128xf32> to vector<128x1xf32>
      %cst_13 = arith.constant 3.200000e+01 : f32
      %21 = vector.broadcast %cst_13 : f32 to vector<128x1xf32>
      %22 = arith.divf %20, %21 : vector<128x1xf32>
      %cst_14 = arith.constant 9.99999996E-13 : f32
      %23 = vector.broadcast %cst_14 : f32 to vector<128x1xf32>
      %24 = arith.addf %22, %23 : vector<128x1xf32>
      %25 = math.rsqrt %24 : vector<128x1xf32>
      %26 = vector.broadcast %25 : vector<128x1xf32> to vector<128x32xf32>
      %27 = arith.mulf %17, %26 : vector<128x32xf32>
      %c0_15 = arith.constant 0 : index
      %c0_16 = arith.constant 0 : index
      %28 = vector.load %arg3[%c0_15, %c0_16] : memref<1x32xf32, #tpu.memory_space<vmem>>, vector<1x32xf32>
      %29 = vector.broadcast %28 : vector<1x32xf32> to vector<128x32xf32>
      %30 = arith.mulf %27, %29 : vector<128x32xf32>
      %c0_17 = arith.constant 0 : index
      %c0_18 = arith.constant 0 : index
      %31 = vector.load %arg4[%c0_17, %c0_18] : memref<1x32xf32, #tpu.memory_space<vmem>>, vector<1x32xf32>
      %32 = vector.broadcast %31 : vector<1x32xf32> to vector<128x32xf32>
      %33 = arith.addf %30, %32 : vector<128x32xf32>
      %34 = arith.truncf %33 : vector<128x32xf32> to vector<128x32xbf16>
      %c0_19 = arith.constant 0 : index
      %c0_20 = arith.constant 0 : index
      %35 = vector.load %arg8[%c0_19, %c0_20] : memref<128x32xbf16, #tpu.memory_space<vmem>>, vector<128x32xbf16>
      tpu.vector_store %arg8[%c0_19, %c0_20], %34 {strides = array<i32>} : memref<128x32xbf16, #tpu.memory_space<vmem>>, vector<128x32xbf16>,
    } else {
    }
    %c0 = arith.constant 0 : index
    %c0_1 = arith.constant 0 : index
    %3 = vector.load %arg8[%c0, %c0_1] : memref<128x32xbf16, #tpu.memory_space<vmem>>, vector<128x32xbf16>
    %c0_2 = arith.constant 0 : index
    %c0_3 = arith.constant 0 : index
    %4 = vector.load %arg5[%c0_2, %c0_3] : memref<32x128xbf16, #tpu.memory_space<vmem>>, vector<32x128xbf16>
    %cst = arith.constant dense<0.000000e+00> : vector<128x128xf32>
    %5 = tpu.matmul %3, %4, %cst {dimension_numbers = #tpu.dot_dimension_numbers<[1], [0], [0], [1], [0, 0, 1, 1], [], []>} : vector<128x32xbf16>, vector<32x128xbf16>, vector<128x128xf32> -> vector<128x128xf32>
    %c0_4 = arith.constant 0 : index
    %c0_5 = arith.constant 0 : index
    %6 = vector.load %arg6[%c0_4, %c0_5] : memref<1x128xf32, #tpu.memory_space<vmem>>, vector<1x128xf32>
    %7 = vector.broadcast %6 : vector<1x128xf32> to vector<128x128xf32>
    %8 = arith.addf %5, %7 : vector<128x128xf32>
    %9 = arith.truncf %8 : vector<128x128xf32> to vector<128x128xbf16>
    %c0_6 = arith.constant 0 : index
    %c0_7 = arith.constant 0 : index
    %10 = vector.load %arg7[%c0_6, %c0_7] : memref<128x128xbf16, #tpu.memory_space<vmem>>, vector<128x128xbf16>
    tpu.vector_store %arg7[%c0_6, %c0_7], %9 {strides = array<i32>} : memref<128x128xbf16, #tpu.memory_space<vmem>>, vector<128x128xbf16>,
    return
  }
  func.func @transform_0(%arg0: i32, %arg1: i32) -> (i32, i32) {
    %c0_i32 = arith.constant 0 : i32
    %c0_i32_0 = arith.constant 0 : i32
    return %arg0, %c0_i32 : i32, i32
  }
  func.func @transform_1(%arg0: i32, %arg1: i32) -> (i32, i32) {
    %c0_i32 = arith.constant 0 : i32
    %c0_i32_0 = arith.constant 0 : i32
    %c0_i32_1 = arith.constant 0 : i32
    return %c0_i32, %c0_i32_0 : i32, i32
  }
  func.func @transform_2(%arg0: i32, %arg1: i32) -> (i32, i32) {
    %c0_i32 = arith.constant 0 : i32
    %c0_i32_0 = arith.constant 0 : i32
    %c0_i32_1 = arith.constant 0 : i32
    return %c0_i32, %c0_i32_0 : i32, i32
  }
  func.func @transform_3(%arg0: i32, %arg1: i32) -> (i32, i32) {
    %c0_i32 = arith.constant 0 : i32
    %c0_i32_0 = arith.constant 0 : i32
    return %c0_i32, %arg1 : i32, i32
  }
  func.func @transform_4(%arg0: i32, %arg1: i32) -> (i32, i32) {
    %c0_i32 = arith.constant 0 : i32
    %c0_i32_0 = arith.constant 0 : i32
    return %c0_i32, %arg1 : i32, i32
  }
  func.func @transform_5(%arg0: i32, %arg1: i32) -> (i32, i32) {
    %c0_i32 = arith.constant 0 : i32
    return %arg0, %arg1 : i32, i32
  }
}

</mosaic_0001>

<llo_original>
// kernel: tpu_custom_call.1
$region0: #{tpu_custom_call.1}
  #allocation0 [shape = 'u32[]', space=smem, size = 0x4, offset = 0x4, fixed_abs, tag = 'smem constant byte address 0x4 - core index']
  #allocation1 [shape = 'u32[144,128]{1,0:T(1,128)}', space=vmem, size = 0x12000, scoped, tag = 'internal scratch']
  #allocation2 [shape = 'bf16[128,32]{1,0:T(16,128)(2,1)}', space=vmem, size = 0x8000, scoped, tag = 'scratch operand']
  %s0 = inlined_call_operand.vmem [shape: f32[384,32], index: 0, kind: input, shape index: {}]
  %s1 = inlined_call_operand.vmem [shape: f32[1,32], index: 1, kind: input, shape index: {}]
  %s2 = inlined_call_operand.vmem [shape: f32[1,32], index: 2, kind: input, shape index: {}]
  %s3 = inlined_call_operand.vmem [shape: bf16[32,128], index: 3, kind: input, shape index: {}]
  %s4 = inlined_call_operand.vmem [shape: f32[1,128], index: 4, kind: input, shape index: {}]
  %s5 = inlined_call_operand.hbm [shape: bf16[384,128], index: 5, kind: output, shape index: {}]
  %s6 = sld [smem:[#allocation0]]
  $region57: #{tpu_custom_call.1} parent=0
    _
  %s8 = ssub.s32 1, %s6
  %s9 = scalar_select 0, %s8, %s6
  $region1: #{tpu_custom_call.1} parent=0
    #allocation3 [shape = 'u8[65536]{0}', space=vmem, size = 0x10000, scoped, tag = 'output window, operand 0']
    #allocation4 [shape = 's32[2]{0}', space=sflag, size = 0x8, scoped, tag = 'scoped memory for tpu_custom_call.1']
    %10 = vsyncpa [#allocation4], 0
    %s11 = scalar_lea.sflag [#allocation4], 1
    %12 = vsyncpa %s11, 0
    loop: start=0, step=1, limit=5
    $region2: #{tpu_custom_call.1} parent=1 // loop_pre_header
      _
    $region3: #{tpu_custom_call.1} parent=1 // loop_header
      %s14 = sphi 0, %s18
      %p15 = scmp.ge.s32.totalorder %s14, 5
      %s21 = sphi 0, %s33
      %s22 = sphi 0, %s29
      %s23 = sphi 0, %s21
      %s24 = sphi 0, %s22
      %s25 = sphi 0, %s23
      %s26 = sphi 0, %s24
      %s36 = sphi 0, %s38
      %s39 = sphi 0, %s36
      %s40 = sphi 0, %s39
      %s56 = sphi 0, %s40
      %s60 = sphi 0, %s60
      %s62 = sphi 0, %s60
      %s63 = sphi 0, %s62
      %s77 = sphi 0, %s63
      %s81 = sphi 0, %s81
      %s83 = sphi 0, %s81
      %s84 = sphi 0, %s83
      %s98 = sphi 0, %s84
      %s104 = sphi 0, %s106
      %s107 = sphi 0, %s104
      %s108 = sphi 0, %s107
      %s124 = sphi 0, %s108
      %s130 = sphi 0, %s132
      %s133 = sphi 0, %s130
      %s134 = sphi 0, %s133
      %s150 = sphi 0, %s134
      %s158 = sphi 0, %s160
      %s161 = sphi 0, %s158
      %s162 = sphi 0, %s161
      %s178 = sphi 0, %s162
    $region4: #{tpu_custom_call.1} parent=1 // loop_header_branch
      %17 = sbr.rel (%p15) target = $region8
    $region5: #{tpu_custom_call.1} parent=1 // loop_body
      %s19 = ssub.s32 %s14, 1
      %s20 = ssub.s32 %s14, 2
      %s27 = sadd.s32 1, %s22
      %p28 = scmp.ge.s32.totalorder %s27, 1
      %s29 = scalar_select %p28, 0, %s27
      %s30 = sadd.s32 1, %s21
      %s31 = scalar_select %p28, %s30, %s21
      %p32 = scmp.ge.s32.totalorder %s31, 3
      %s33 = scalar_select %p32, 0, %s31
      %s34 = ssub.s32 %s21, %s33
      %p35 = scmp.eq.s32.totalorder %s34, 0
      %s37 = sadd.s32 %s36, 1
      %s38 = scalar_select %p35, %s36, %s37
      %p41 = pneg %p35
      %p42 = scmp.eq.s32.totalorder %s14, 2
      %p43 = por %p41, %p42
      %p44 = scmp.ne.s32.totalorder %s36, %s39
      %p45 = scmp.eq.s32.totalorder %s14, 0
      %p46 = por %p44, %p45
      %p47 = scmp.ne.s32.totalorder %s36, %s39
      %p48 = scmp.eq.s32.totalorder %s19, 2
      %p49 = por %p47, %p48
      %p50 = scmp.ne.s32.totalorder %s39, %s40
      %p51 = scmp.eq.s32.totalorder %s19, 0
      %p52 = por %p50, %p51
      %p53 = scmp.ne.s32.totalorder %s39, %s40
      %p54 = scmp.eq.s32.totalorder %s20, 2
      %p55 = por %p53, %p54
      %p57 = scmp.ne.s32.totalorder %s40, %s56
      %p58 = scmp.eq.s32.totalorder %s20, 0
      %p59 = por %p57, %p58
      %s61 = sadd.s32 %s60, 1
      %p64 = scmp.eq.s32.totalorder %s14, 2
      %p65 = scmp.ne.s32.totalorder %s60, %s62
      %p66 = scmp.eq.s32.totalorder %s14, 0
      %p67 = por %p65, %p66
      %p68 = scmp.ne.s32.totalorder %s60, %s62
      %p69 = scmp.eq.s32.totalorder %s19, 2
      %p70 = por %p68, %p69
      %p71 = scmp.ne.s32.totalorder %s62, %s63
      %p72 = scmp.eq.s32.totalorder %s19, 0
      %p73 = por %p71, %p72
      %p74 = scmp.ne.s32.totalorder %s62, %s63
      %p75 = scmp.eq.s32.totalorder %s20, 2
      %p76 = por %p74, %p75
      %p78 = scmp.ne.s32.totalorder %s63, %s77
      %p79 = scmp.eq.s32.totalorder %s20, 0
      %p80 = por %p78, %p79
      %s82 = sadd.s32 %s81, 1
      %p85 = scmp.eq.s32.totalorder %s14, 2
      %p86 = scmp.ne.s32.totalorder %s81, %s83
      %p87 = scmp.eq.s32.totalorder %s14, 0
      %p88 = por %p86, %p87
      %p89 = scmp.ne.s32.totalorder %s81, %s83
      %p90 = scmp.eq.s32.totalorder %s19, 2
      %p91 = por %p89, %p90
      %p92 = scmp.ne.s32.totalorder %s83, %s84
      %p93 = scmp.eq.s32.totalorder %s19, 0
      %p94 = por %p92, %p93
      %p95 = scmp.ne.s32.totalorder %s83, %s84
      %p96 = scmp.eq.s32.totalorder %s20, 2
      %p97 = por %p95, %p96
      %p99 = scmp.ne.s32.totalorder %s84, %s98
      %p100 = scmp.eq.s32.totalorder %s20, 0
      %p101 = por %p99, %p100
      %s102 = ssub.s32 %s22, %s29
      %p103 = scmp.eq.s32.totalorder %s102, 0
      %s105 = sadd.s32 %s104, 1
      %s106 = scalar_select %p103, %s104, %s105
      %p109 = pneg %p103
      %p110 = scmp.eq.s32.totalorder %s14, 2
      %p111 = por %p109, %p110
      %p112 = scmp.ne.s32.totalorder %s104, %s107
      %p113 = scmp.eq.s32.totalorder %s14, 0
      %p114 = por %p112, %p113
      %p115 = scmp.ne.s32.totalorder %s104, %s107
      %p116 = scmp.eq.s32.totalorder %s19, 2
      %p117 = por %p115, %p116
      %p118 = scmp.ne.s32.totalorder %s107, %s108
      %p119 = scmp.eq.s32.totalorder %s19, 0
      %p120 = por %p118, %p119
      %p121 = scmp.ne.s32.totalorder %s107, %s108
      %p122 = scmp.eq.s32.totalorder %s20, 2
      %p123 = por %p121, %p122
      %p125 = scmp.ne.s32.totalorder %s108, %s124
      %p126 = scmp.eq.s32.totalorder %s20, 0
      %p127 = por %p125, %p126
      %s128 = ssub.s32 %s22, %s29
      %p129 = scmp.eq.s32.totalorder %s128, 0
      %s131 = sadd.s32 %s130, 1
      %s132 = scalar_select %p129, %s130, %s131
      %p135 = pneg %p129
      %p136 = scmp.eq.s32.totalorder %s14, 2
      %p137 = por %p135, %p136
      %p138 = scmp.ne.s32.totalorder %s130, %s133
      %p139 = scmp.eq.s32.totalorder %s14, 0
      %p140 = por %p138, %p139
      %p141 = scmp.ne.s32.totalorder %s130, %s133
      %p142 = scmp.eq.s32.totalorder %s19, 2
      %p143 = por %p141, %p142
      %p144 = scmp.ne.s32.totalorder %s133, %s134
      %p145 = scmp.eq.s32.totalorder %s19, 0
      %p146 = por %p144, %p145
      %p147 = scmp.ne.s32.totalorder %s133, %s134
      %p148 = scmp.eq.s32.totalorder %s20, 2
      %p149 = por %p147, %p148
      %p151 = scmp.ne.s32.totalorder %s134, %s150
      %p152 = scmp.eq.s32.totalorder %s20, 0
      %p153 = por %p151, %p152
      %s154 = ssub.s32 %s21, %s33
      %s155 = ssub.s32 %s22, %s29
      %s156 = sor.u32 %s154, %s155
      %p157 = scmp.eq.s32.totalorder %s156, 0
      %s159 = sadd.s32 %s158, 1
      %s160 = scalar_select %p157, %s158, %s159
      %p163 = pneg %p157
      %p164 = scmp.eq.s32.totalorder %s14, 2
      %p165 = por %p163, %p164
      %p166 = scmp.ne.s32.totalorder %s158, %s161
      %p167 = scmp.eq.s32.totalorder %s14, 0
      %p168 = por %p166, %p167
      %p169 = scmp.ne.s32.totalorder %s158, %s161
      %p170 = scmp.eq.s32.totalorder %s19, 2
      %p171 = por %p169, %p170
      %p172 = scmp.ne.s32.totalorder %s161, %s162
      %p173 = scmp.eq.s32.totalorder %s19, 0
      %p174 = por %p172, %p173
      %p175 = scmp.ne.s32.totalorder %s161, %s162
      %p176 = scmp.eq.s32.totalorder %s20, 2
      %p177 = por %p175, %p176
      %p179 = scmp.ne.s32.totalorder %s162, %s178
      %p180 = scmp.eq.s32.totalorder %s20, 0
      %p181 = por %p179, %p180
      %p182 = scmp.le.s32.totalorder 1, %s14
      %p183 = scmp.lt.s32.totalorder %s14, 4
      %p184 = pnand %p182, %p183
      %p185 = pneg %p184
      // Predicated region
      $region9: #{tpu_custom_call.1} parent=5 // pred_check
        _
      $region10: #{tpu_custom_call.1} parent=5 // pred_check_branch
        %187 = sbr.rel (%p184) target = $region12
      $region11: #{tpu_custom_call.1} parent=5 // pred_region
        %s188 = ssub.s32 %s14, 1
        // Predicated region
        $region13: #{tpu_custom_call.1} parent=11 // pred_check
          %p189 = pneg %p73
        $region14: #{tpu_custom_call.1} parent=11 // pred_check_branch
          %191 = sbr.rel (%p189) target = $region16
        $region15: #{tpu_custom_call.1} parent=11 // pred_region
          _
        $region16: #{tpu_custom_call.1} parent=11 // pred_fallthru
          _
        // Predicated region
        $region17: #{tpu_custom_call.1} parent=11 // pred_check
          %p192 = pneg %p94
        $region18: #{tpu_custom_call.1} parent=11 // pred_check_branch
          %194 = sbr.rel (%p192) target = $region20
        $region19: #{tpu_custom_call.1} parent=11 // pred_region
          _
        $region20: #{tpu_custom_call.1} parent=11 // pred_fallthru
          _
        // Predicated region
        $region21: #{tpu_custom_call.1} parent=11 // pred_check
          %p195 = pneg %p120
        $region22: #{tpu_custom_call.1} parent=11 // pred_check_branch
          %197 = sbr.rel (%p195) target = $region24
        $region23: #{tpu_custom_call.1} parent=11 // pred_region
          %p198 = scmp.lt.s32.totalorder %s24, 0
          %s199 = scalar_select %p198, %s24, 0
          %s200 = smul.addr %s199, 4
          %s201 = scalar_lea.vmem %s3, %s200
        $region24: #{tpu_custom_call.1} parent=11 // pred_fallthru
          _
        // Predicated region
        $region25: #{tpu_custom_call.1} parent=11 // pred_check
          %p202 = pneg %p146
        $region26: #{tpu_custom_call.1} parent=11 // pred_check_branch
          %204 = sbr.rel (%p202) target = $region28
        $region27: #{tpu_custom_call.1} parent=11 // pred_region
          %p205 = scmp.lt.s32.totalorder %s24, 0
          %s206 = scalar_select %p205, %s24, 0
          %s207 = scalar_lea.vmem %s4, %s206
        $region28: #{tpu_custom_call.1} parent=11 // pred_fallthru
          _
      $region12: #{tpu_custom_call.1} parent=5 // pred_fallthru
        _
      %p208 = scmp.lt.s32.totalorder %s14, 3
      // Predicated region
      $region29: #{tpu_custom_call.1} parent=5 // pred_check
        %p209 = pneg %p208
      $region30: #{tpu_custom_call.1} parent=5 // pred_check_branch
        %211 = sbr.rel (%p209) target = $region32
      $region31: #{tpu_custom_call.1} parent=5 // pred_region
        // Predicated region
        $region33: #{tpu_custom_call.1} parent=31 // pred_check
          %p212 = pneg %p46
        $region34: #{tpu_custom_call.1} parent=31 // pred_check_branch
          %214 = sbr.rel (%p212) target = $region36
        $region35: #{tpu_custom_call.1} parent=31 // pred_region
          %s215 = smul.u32 16, %s21
          %p216 = scmp.lt.s32.totalorder %s215, 47
          %s217 = scalar_select %p216, %s215, 47
          %s218 = smul.addr %s217, 8
          %s219 = scalar_lea.vmem %s0, %s218
          %s220 = smul.u32 16, %s21
        $region36: #{tpu_custom_call.1} parent=31 // pred_fallthru
          _
      $region32: #{tpu_custom_call.1} parent=5 // pred_fallthru
        _
      %p221 = scmp.le.s32.totalorder 1, %s14
      %p222 = scmp.lt.s32.totalorder %s14, 4
      %p223 = pnand %p221, %p222
      %p224 = pneg %p223
      // Predicated region
      $region37: #{tpu_custom_call.1} parent=5 // pred_check
        _
      $region38: #{tpu_custom_call.1} parent=5 // pred_check_branch
        %226 = sbr.rel (%p223) target = $region40
      $region39: #{tpu_custom_call.1} parent=5 // pred_region
        %s227 = ssub.s32 %s14, 1
        %s228 = smul.u32 16, %s23
        %p229 = scmp.lt.s32.totalorder %s228, 47
        %s230 = scalar_select %p229, %s228, 47
        %s231 = smul.addr %s230, 8
        %s232 = scalar_lea.vmem %s0, %s231
        %p233 = pneg %p52
        %p234 = pneg %p49
        %p235 = pneg %p73
        %p236 = pneg %p70
        %p237 = pneg %p94
        %p238 = pneg %p91
        %p239 = scmp.lt.s32.totalorder %s24, 0
        %s240 = scalar_select %p239, %s24, 0
        %s241 = smul.addr %s240, 4
        %s242 = scalar_lea.vmem %s3, %s241
        %p243 = pneg %p120
        %p244 = pneg %p117
        %p245 = scmp.lt.s32.totalorder %s24, 0
        %s246 = scalar_select %p245, %s24, 0
        %s247 = scalar_lea.vmem %s4, %s246
        %p248 = pneg %p146
        %p249 = pneg %p143
        %p250 = pneg %p174
        %p251 = pneg %p171
        %s252 = sand.u32 %s161, 1
        %s253 = scalar_lea.sflag [#allocation4], %s252
        %s254 = sand.u32 %s161, 1
        %s255 = smul.addr %s254, 64
        %s256 = scalar_lea.vmem [#allocation3], %s255
        %s257 = smul.u32 16, %s23
        %p258 = scmp.lt.s32.totalorder %s257, 47
        %s259 = scalar_select %p258, %s257, 47
        %s260 = smul.addr %s259, 8
        %s261 = scalar_lea.vmem %s0, %s260
        %s262 = smul.u32 16, %s23
        %p263 = scmp.lt.s32.totalorder %s24, 0
        %s264 = scalar_select %p263, %s24, 0
        %s265 = smul.addr %s264, 4
        %s266 = scalar_lea.vmem %s3, %s265
        %p267 = scmp.lt.s32.totalorder %s24, 0
        %s268 = scalar_select %p267, %s24, 0
        %s269 = scalar_lea.vmem %s4, %s268
        %s270 = smul.u32 16, %s23
        %p272 = scmp.eq.s32.totalorder %s24, 0
        // Predicated region
        $region41: #{tpu_custom_call.1} parent=39 // pred_check
          %p273 = pneg %p272
        $region42: #{tpu_custom_call.1} parent=39 // pred_check_branch
          %275 = sbr.rel (%p273) target = $region44
        $region43: #{tpu_custom_call.1} parent=39 // pred_region
          %v276 = vld [vmem:[%s261] sm:$0xff]
          %v277 = vld [vmem:[%s261 + $0x8] sm:$0xff]
          %v278 = vld [vmem:[%s261 + $0x10] sm:$0xff]
          %v279 = vld [vmem:[%s261 + $0x18] sm:$0xff]
          %v280 = vld [vmem:[%s261 + $0x20] sm:$0xff]
          %v281 = vld [vmem:[%s261 + $0x28] sm:$0xff]
          %v282 = vld [vmem:[%s261 + $0x30] sm:$0xff]
          %v283 = vld [vmem:[%s261 + $0x38] sm:$0xff]
          %v284 = vld [vmem:[%s261 + $0x40] sm:$0xff]
          %v285 = vld [vmem:[%s261 + $0x48] sm:$0xff]
          %v286 = vld [vmem:[%s261 + $0x50] sm:$0xff]
          %v287 = vld [vmem:[%s261 + $0x58] sm:$0xff]
          %v288 = vld [vmem:[%s261 + $0x60] sm:$0xff]
          %v289 = vld [vmem:[%s261 + $0x68] sm:$0xff]
          %v290 = vld [vmem:[%s261 + $0x70] sm:$0xff]
          %v291 = vld [vmem:[%s261 + $0x78] sm:$0xff]
          %vm292 = vcmask 261120
          %v293 = vsel %vm292, %v276, 0.0
          %294 = vadd.xlane.f32.xlu0 %v293
          %v295 = vpop.xlane.xlu0 %294
          %v296 = vsel %vm292, %v277, 0.0
          %297 = vadd.xlane.f32.xlu0 %v296
          %v298 = vpop.xlane.xlu0 %297
          %v299 = vsel %vm292, %v278, 0.0
          %300 = vadd.xlane.f32.xlu0 %v299
          %v301 = vpop.xlane.xlu0 %300
          %v302 = vsel %vm292, %v279, 0.0
          %303 = vadd.xlane.f32.xlu0 %v302
          %v304 = vpop.xlane.xlu0 %303
          %v305 = vsel %vm292, %v280, 0.0
          %306 = vadd.xlane.f32.xlu0 %v305
          %v307 = vpop.xlane.xlu0 %306
          %v308 = vsel %vm292, %v281, 0.0
          %309 = vadd.xlane.f32.xlu0 %v308
          %v310 = vpop.xlane.xlu0 %309
          %v311 = vsel %vm292, %v282, 0.0
          %312 = vadd.xlane.f32.xlu0 %v311
          %v313 = vpop.xlane.xlu0 %312
          %v314 = vsel %vm292, %v283, 0.0
          %315 = vadd.xlane.f32.xlu0 %v314
          %v316 = vpop.xlane.xlu0 %315
          %v317 = vsel %vm292, %v284, 0.0
          %318 = vadd.xlane.f32.xlu0 %v317
          %v319 = vpop.xlane.xlu0 %318
          %v320 = vsel %vm292, %v285, 0.0
          %321 = vadd.xlane.f32.xlu0 %v320
          %v322 = vpop.xlane.xlu0 %321
          %v323 = vsel %vm292, %v286, 0.0
          %324 = vadd.xlane.f32.xlu0 %v323
          %v325 = vpop.xlane.xlu0 %324
          %v326 = vsel %vm292, %v287, 0.0
          %327 = vadd.xlane.f32.xlu0 %v326
          %v328 = vpop.xlane.xlu0 %327
          %v329 = vsel %vm292, %v288, 0.0
          %330 = vadd.xlane.f32.xlu0 %v329
          %v331 = vpop.xlane.xlu0 %330
          %v332 = vsel %vm292, %v289, 0.0
          %333 = vadd.xlane.f32.xlu0 %v332
          %v334 = vpop.xlane.xlu0 %333
          %v335 = vsel %vm292, %v290, 0.0
          %336 = vadd.xlane.f32.xlu0 %v335
          %v337 = vpop.xlane.xlu0 %336
          %v338 = vsel %vm292, %v291, 0.0
          %339 = vadd.xlane.f32.xlu0 %v338
          %v340 = vpop.xlane.xlu0 %339
          %v341 = vrcp.pop 32.0
          %v342 = vmul.f32 %v295, %v341
          %v343 = vmul.f32 %v298, %v341
          %v344 = vmul.f32 %v301, %v341
          %v345 = vmul.f32 %v304, %v341
          %v346 = vmul.f32 %v307, %v341
          %v347 = vmul.f32 %v310, %v341
          %v348 = vmul.f32 %v313, %v341
          %v349 = vmul.f32 %v316, %v341
          %v350 = vmul.f32 %v319, %v341
          %v351 = vmul.f32 %v322, %v341
          %v352 = vmul.f32 %v325, %v341
          %v353 = vmul.f32 %v328, %v341
          %v354 = vmul.f32 %v331, %v341
          %v355 = vmul.f32 %v334, %v341
          %v356 = vmul.f32 %v337, %v341
          %v357 = vmul.f32 %v340, %v341
          %v358 = vsub.f32 %v276, %v342
          %v359 = vsub.f32 %v277, %v343
          %v360 = vsub.f32 %v278, %v344
          %v361 = vsub.f32 %v279, %v345
          %v362 = vsub.f32 %v280, %v346
          %v363 = vsub.f32 %v281, %v347
          %v364 = vsub.f32 %v282, %v348
          %v365 = vsub.f32 %v283, %v349
          %v366 = vsub.f32 %v284, %v350
          %v367 = vsub.f32 %v285, %v351
          %v368 = vsub.f32 %v286, %v352
          %v369 = vsub.f32 %v287, %v353
          %v370 = vsub.f32 %v288, %v354
          %v371 = vsub.f32 %v289, %v355
          %v372 = vsub.f32 %v290, %v356
          %v373 = vsub.f32 %v291, %v357
          %v374 = vmul.f32 %v358, %v358
          %v375 = vmul.f32 %v359, %v359
          %v376 = vmul.f32 %v360, %v360
          %v377 = vmul.f32 %v361, %v361
          %v378 = vmul.f32 %v362, %v362
          %v379 = vmul.f32 %v363, %v363
          %v380 = vmul.f32 %v364, %v364
          %v381 = vmul.f32 %v365, %v365
          %v382 = vmul.f32 %v366, %v366
          %v383 = vmul.f32 %v367, %v367
          %v384 = vmul.f32 %v368, %v368
          %v385 = vmul.f32 %v369, %v369
          %v386 = vmul.f32 %v370, %v370
          %v387 = vmul.f32 %v371, %v371
          %v388 = vmul.f32 %v372, %v372
          %v389 = vmul.f32 %v373, %v373
          %v390 = vsel %vm292, %v374, 0.0
          %391 = vadd.xlane.f32.xlu0 %v390
          %v392 = vpop.xlane.xlu0 %391
          %v393 = vsel %vm292, %v375, 0.0
          %394 = vadd.xlane.f32.xlu0 %v393
          %v395 = vpop.xlane.xlu0 %394
          %v396 = vsel %vm292, %v376, 0.0
          %397 = vadd.xlane.f32.xlu0 %v396
          %v398 = vpop.xlane.xlu0 %397
          %v399 = vsel %vm292, %v377, 0.0
          %400 = vadd.xlane.f32.xlu0 %v399
          %v401 = vpop.xlane.xlu0 %400
          %v402 = vsel %vm292, %v378, 0.0
          %403 = vadd.xlane.f32.xlu0 %v402
          %v404 = vpop.xlane.xlu0 %403
          %v405 = vsel %vm292, %v379, 0.0
          %406 = vadd.xlane.f32.xlu0 %v405
          %v407 = vpop.xlane.xlu0 %406
          %v408 = vsel %vm292, %v380, 0.0
          %409 = vadd.xlane.f32.xlu0 %v408
          %v410 = vpop.xlane.xlu0 %409
          %v411 = vsel %vm292, %v381, 0.0
          %412 = vadd.xlane.f32.xlu0 %v411
          %v413 = vpop.xlane.xlu0 %412
          %v414 = vsel %vm292, %v382, 0.0
          %415 = vadd.xlane.f32.xlu0 %v414
          %v416 = vpop.xlane.xlu0 %415
          %v417 = vsel %vm292, %v383, 0.0
          %418 = vadd.xlane.f32.xlu0 %v417
          %v419 = vpop.xlane.xlu0 %418
          %v420 = vsel %vm292, %v384, 0.0
          %421 = vadd.xlane.f32.xlu0 %v420
          %v422 = vpop.xlane.xlu0 %421
          %v423 = vsel %vm292, %v385, 0.0
          %424 = vadd.xlane.f32.xlu0 %v423
          %v425 = vpop.xlane.xlu0 %424
          %v426 = vsel %vm292, %v386, 0.0
          %427 = vadd.xlane.f32.xlu0 %v426
          %v428 = vpop.xlane.xlu0 %427
          %v429 = vsel %vm292, %v387, 0.0
          %430 = vadd.xlane.f32.xlu0 %v429
          %v431 = vpop.xlane.xlu0 %430
          %v432 = vsel %vm292, %v388, 0.0
          %433 = vadd.xlane.f32.xlu0 %v432
          %v434 = vpop.xlane.xlu0 %433
          %v435 = vsel %vm292, %v389, 0.0
          %436 = vadd.xlane.f32.xlu0 %v435
          %v437 = vpop.xlane.xlu0 %436
          %v438 = vmul.f32 %v392, %v341
          %v439 = vmul.f32 %v395, %v341
          %v440 = vmul.f32 %v398, %v341
          %v441 = vmul.f32 %v401, %v341
          %v442 = vmul.f32 %v404, %v341
          %v443 = vmul.f32 %v407, %v341
          %v444 = vmul.f32 %v410, %v341
          %v445 = vmul.f32 %v413, %v341
          %v446 = vmul.f32 %v416, %v341
          %v447 = vmul.f32 %v419, %v341
          %v448 = vmul.f32 %v422, %v341
          %v449 = vmul.f32 %v425, %v341
          %v450 = vmul.f32 %v428, %v341
          %v451 = vmul.f32 %v431, %v341
          %v452 = vmul.f32 %v434, %v341
          %v453 = vmul.f32 %v437, %v341
          %v454 = vadd.f32 %v438, 1e-12
          %v455 = vadd.f32 %v439, 1e-12
          %v456 = vadd.f32 %v440, 1e-12
          %v457 = vadd.f32 %v441, 1e-12
          %v458 = vadd.f32 %v442, 1e-12
          %v459 = vadd.f32 %v443, 1e-12
          %v460 = vadd.f32 %v444, 1e-12
          %v461 = vadd.f32 %v445, 1e-12
          %v462 = vadd.f32 %v446, 1e-12
          %v463 = vadd.f32 %v447, 1e-12
          %v464 = vadd.f32 %v448, 1e-12
          %v465 = vadd.f32 %v449, 1e-12
          %v466 = vadd.f32 %v450, 1e-12
          %v467 = vadd.f32 %v451, 1e-12
          %v468 = vadd.f32 %v452, 1e-12
          %v469 = vadd.f32 %v453, 1e-12
          %v470 = vrsqrt.pop %v454
          %v471 = vrsqrt.pop %v455
          %v472 = vrsqrt.pop %v456
          %v473 = vrsqrt.pop %v457
          %v474 = vrsqrt.pop %v458
          %v475 = vrsqrt.pop %v459
          %v476 = vrsqrt.pop %v460
          %v477 = vrsqrt.pop %v461
          %v478 = vrsqrt.pop %v462
          %v479 = vrsqrt.pop %v463
          %v480 = vrsqrt.pop %v464
          %v481 = vrsqrt.pop %v465
          %v482 = vrsqrt.pop %v466
          %v483 = vrsqrt.pop %v467
          %v484 = vrsqrt.pop %v468
          %v485 = vrsqrt.pop %v469
          %v486 = vmul.f32 %v358, %v470
          %v487 = vmul.f32 %v359, %v471
          %v488 = vmul.f32 %v360, %v472
          %v489 = vmul.f32 %v361, %v473
          %v490 = vmul.f32 %v362, %v474
          %v491 = vmul.f32 %v363, %v475
          %v492 = vmul.f32 %v364, %v476
          %v493 = vmul.f32 %v365, %v477
          %v494 = vmul.f32 %v366, %v478
          %v495 = vmul.f32 %v367, %v479
          %v496 = vmul.f32 %v368, %v480
          %v497 = vmul.f32 %v369, %v481
          %v498 = vmul.f32 %v370, %v482
          %v499 = vmul.f32 %v371, %v483
          %v500 = vmul.f32 %v372, %v484
          %v501 = vmul.f32 %v373, %v485
          %v502 = vld [vmem:[%s1] sm:$0x1]
          %v504 = vlaneseq
          %v505 = vshrl.u32 %v504, 7
          %v506 = vsub.s32 0, %v505
          %v507 = vrot.slane %v502, %v506
          %v509 = vmul.f32 %v486, %v507
          %v510 = vmul.f32 %v487, %v507
          %v511 = vmul.f32 %v488, %v507
          %v512 = vmul.f32 %v489, %v507
          %v513 = vmul.f32 %v490, %v507
          %v514 = vmul.f32 %v491, %v507
          %v515 = vmul.f32 %v492, %v507
          %v516 = vmul.f32 %v493, %v507
          %v517 = vmul.f32 %v494, %v507
          %v518 = vmul.f32 %v495, %v507
          %v519 = vmul.f32 %v496, %v507
          %v520 = vmul.f32 %v497, %v507
          %v521 = vmul.f32 %v498, %v507
          %v522 = vmul.f32 %v499, %v507
          %v523 = vmul.f32 %v500, %v507
          %v524 = vmul.f32 %v501, %v507
          %v525 = vld [vmem:[%s2] sm:$0x1]
          %v527 = vlaneseq
          %v528 = vshrl.u32 %v527, 7
          %v529 = vsub.s32 0, %v528
          %v530 = vrot.slane %v525, %v529
          %v532 = vadd.f32 %v509, %v530
          %v533 = vadd.f32 %v510, %v530
          %v534 = vadd.f32 %v511, %v530
          %v535 = vadd.f32 %v512, %v530
          %v536 = vadd.f32 %v513, %v530
          %v537 = vadd.f32 %v514, %v530
          %v538 = vadd.f32 %v515, %v530
          %v539 = vadd.f32 %v516, %v530
          %v540 = vadd.f32 %v517, %v530
          %v541 = vadd.f32 %v518, %v530
          %v542 = vadd.f32 %v519, %v530
          %v543 = vadd.f32 %v520, %v530
          %v544 = vadd.f32 %v521, %v530
          %v545 = vadd.f32 %v522, %v530
          %v546 = vadd.f32 %v523, %v530
          %v547 = vadd.f32 %v524, %v530
          %v548 = vpack.c.bf16 %v533, %v532
          %v549 = vpack.c.bf16 %v535, %v534
          %v550 = vpack.c.bf16 %v537, %v536
          %v551 = vpack.c.bf16 %v539, %v538
          %v552 = vpack.c.bf16 %v541, %v540
          %v553 = vpack.c.bf16 %v543, %v542
          %v554 = vpack.c.bf16 %v545, %v544
          %v555 = vpack.c.bf16 %v547, %v546
          %556 = vst.msk [vmem:[#allocation2] sm:$0xff] %vm292, %v548
          %557 = vst.msk [vmem:[#allocation2 + $0x8] sm:$0xff] %vm292, %v549
          %558 = vst.msk [vmem:[#allocation2 + $0x10] sm:$0xff] %vm292, %v550
          %559 = vst.msk [vmem:[#allocation2 + $0x18] sm:$0xff] %vm292, %v551
          %560 = vst.msk [vmem:[#allocation2 + $0x20] sm:$0xff] %vm292, %v552
          %561 = vst.msk [vmem:[#allocation2 + $0x28] sm:$0xff] %vm292, %v553
          %562 = vst.msk [vmem:[#allocation2 + $0x30] sm:$0xff] %vm292, %v554
          %563 = vst.msk [vmem:[#allocation2 + $0x38] sm:$0xff] %vm292, %v555
        $region44: #{tpu_custom_call.1} parent=39 // pred_fallthru
          _
        %v564 = vld [vmem:[#allocation2] sm:$0xff]
        %v565 = vld [vmem:[#allocation2 + $0x8] sm:$0xff]
        %v566 = vld [vmem:[#allocation2 + $0x10] sm:$0xff]
        %v567 = vld [vmem:[#allocation2 + $0x18] sm:$0xff]
        %v568 = vld [vmem:[#allocation2 + $0x20] sm:$0xff]
        %v569 = vld [vmem:[#allocation2 + $0x28] sm:$0xff]
        %v570 = vld [vmem:[#allocation2 + $0x30] sm:$0xff]
        %v571 = vld [vmem:[#allocation2 + $0x38] sm:$0xff]
        %v572 = vld [vmem:[%s266] sm:$0xf]
        %v573 = vld [vmem:[%s266 + $0x4] sm:$0xf]
        %v574 = vld [vmem:[%s266 + $0x8] sm:$0xf]
        %v575 = vld [vmem:[%s266 + $0xc] sm:$0xf]
        %v576 = vld [vmem:[%s269] sm:$0x1]
        %v578 = vlaneseq
        %v579 = vshrl.u32 %v578, 7
        %v580 = vsub.s32 0, %v579
        %v581 = vrot.slane %v576, %v580
        %v587 = vunpack.c.l.b16 %v572
        %v588 = vunpack.c.l.b16 %v573
        %v589 = vunpack.c.l.b16 %v574
        %v590 = vunpack.c.l.b16 %v575
        %v591 = vpack.c.b16 %v588, %v587
        %v592 = vpack.c.b16 %v590, %v589
        %vm595 = vcmask 261120
        %v597 = vsel %vm595, %v564, 0
        %v600 = vsel %vm595, %v565, 0
        %v603 = vsel %vm595, %v566, 0
        %v606 = vsel %vm595, %v567, 0
        %v609 = vsel %vm595, %v568, 0
        %v612 = vsel %vm595, %v569, 0
        %v615 = vsel %vm595, %v570, 0
        %v618 = vsel %vm595, %v571, 0
        %620 = vmatprep.subr.bf16.mxu0 0
        %621 = vmatpush1.bf16.msra.mxu0 %v591
        %622 = vmatprep.subr.bf16.mxu0 0
        %623 = vmatpush1.bf16.msra.mxu0 %v592
        %624 = vmatprep.subr.bf16.mxu0 0
        %625 = vmatpush1.bf16.msra.mxu0 0
        %626 = vmatprep.subr.bf16.mxu0 0
        %627 = vmatpush1.bf16.msra.mxu0 0
        %628 = vmatprep.subr.bf16.mxu0 0
        %629 = vmatpush1.bf16.msra.mxu0 0
        %630 = vmatprep.subr.bf16.mxu0 0
        %631 = vmatpush1.bf16.msra.mxu0 0
        %632 = vmatprep.subr.bf16.mxu0 0
        %633 = vmatpush1.bf16.msra.mxu0 0
        %634 = vmatprep.subr.bf16.mxu0 0
        %635 = vmatpush1.bf16.msra.mxu0 0
        %636 = vmatprep.subr.bf16.mxu0 0
        %637 = vmatpush1.bf16.msra.mxu0 0
        %638 = vmatprep.subr.bf16.mxu0 0
        %639 = vmatpush1.bf16.msra.mxu0 0
        %640 = vmatprep.subr.bf16.mxu0 0
        %641 = vmatpush1.bf16.msra.mxu0 0
        %642 = vmatprep.subr.bf16.mxu0 0
        %643 = vmatpush1.bf16.msra.mxu0 0
        %644 = vmatprep.subr.bf16.mxu0 0
        %645 = vmatpush1.bf16.msra.mxu0 0
        %646 = vmatprep.subr.bf16.mxu0 0
        %647 = vmatpush1.bf16.msra.mxu0 0
        %648 = vmatprep.subr.bf16.mxu0 0
        %649 = vmatpush1.bf16.msra.mxu0 0
        %650 = vmatprep.subr.bf16.mxu0 0
        %651 = vmatpush1.bf16.msra.mxu0 0
        %652 = vmatprep.mubr.bf16.mxu0 0
        %653 = vmatmul.mubr.bf16.gmra.mrb[0].mxu0 %v597
        %v654 = vpop.f32.mrb[0].mxu0
        %v655 = vadd.f32 %v581, %v654
        %v656 = vpop.f32.mrb[0].mxu0
        %v657 = vpop.f32.mrb[0].mxu0
        %v658 = vadd.f32 %v581, %v657
        %v659 = vpop.f32.mrb[0].mxu0
        %660 = vmatprep.mubr.bf16.mxu0 0
        %661 = vmatmul.mubr.bf16.gmra.mrb[0].mxu0 %v600
        %v662 = vpop.f32.mrb[0].mxu0
        %v663 = vadd.f32 %v581, %v662
        %v664 = vpop.f32.mrb[0].mxu0
        %v665 = vpop.f32.mrb[0].mxu0
        %v666 = vadd.f32 %v581, %v665
        %v667 = vpop.f32.mrb[0].mxu0
        %668 = vmatprep.mubr.bf16.mxu0 0
        %669 = vmatmul.mubr.bf16.gmra.mrb[0].mxu0 %v603
        %v670 = vpop.f32.mrb[0].mxu0
        %v671 = vadd.f32 %v581, %v670
        %v672 = vpop.f32.mrb[0].mxu0
        %v673 = vpop.f32.mrb[0].mxu0
        %v674 = vadd.f32 %v581, %v673
        %v675 = vpop.f32.mrb[0].mxu0
        %676 = vmatprep.mubr.bf16.mxu0 0
        %677 = vmatmul.mubr.bf16.gmra.mrb[0].mxu0 %v606
        %v678 = vpop.f32.mrb[0].mxu0
        %v679 = vadd.f32 %v581, %v678
        %v680 = vpop.f32.mrb[0].mxu0
        %v681 = vpop.f32.mrb[0].mxu0
        %v682 = vadd.f32 %v581, %v681
        %v683 = vpop.f32.mrb[0].mxu0
        %684 = vmatprep.mubr.bf16.mxu0 0
        %685 = vmatmul.mubr.bf16.gmra.mrb[0].mxu0 %v609
        %v686 = vpop.f32.mrb[0].mxu0
        %v687 = vadd.f32 %v581, %v686
        %v688 = vpop.f32.mrb[0].mxu0
        %v689 = vpop.f32.mrb[0].mxu0
        %v690 = vadd.f32 %v581, %v689
        %v691 = vpop.f32.mrb[0].mxu0
        %692 = vmatprep.mubr.bf16.mxu0 0
        %693 = vmatmul.mubr.bf16.gmra.mrb[0].mxu0 %v612
        %v694 = vpop.f32.mrb[0].mxu0
        %v695 = vadd.f32 %v581, %v694
        %v696 = vpop.f32.mrb[0].mxu0
        %v697 = vpop.f32.mrb[0].mxu0
        %v698 = vadd.f32 %v581, %v697
        %v699 = vpop.f32.mrb[0].mxu0
        %700 = vmatprep.mubr.bf16.mxu0 0
        %701 = vmatmul.mubr.bf16.gmra.mrb[0].mxu0 %v615
        %v702 = vpop.f32.mrb[0].mxu0
        %v703 = vadd.f32 %v581, %v702
        %v704 = vpop.f32.mrb[0].mxu0
        %v705 = vpop.f32.mrb[0].mxu0
        %v706 = vadd.f32 %v581, %v705
        %v707 = vpop.f32.mrb[0].mxu0
        %708 = vmatprep.mubr.bf16.mxu0 0
        %709 = vmatmul.mubr.bf16.gmra.mrb[0].mxu0 %v618
        %v710 = vpop.f32.mrb[0].mxu0
        %v711 = vadd.f32 %v581, %v710
        %v712 = vpop.f32.mrb[0].mxu0
        %v713 = vpop.f32.mrb[0].mxu0
        %v714 = vadd.f32 %v581, %v713
        %v715 = vpop.f32.mrb[0].mxu0
        %716 = vdwg.mxu0
        %v717 = vpack.c.bf16 %v658, %v655
        %v718 = vpack.c.bf16 %v666, %v663
        %v719 = vpack.c.bf16 %v674, %v671
        %v720 = vpack.c.bf16 %v682, %v679
        %v721 = vpack.c.bf16 %v690, %v687
        %v722 = vpack.c.bf16 %v698, %v695
        %v723 = vpack.c.bf16 %v706, %v703
        %v724 = vpack.c.bf16 %v714, %v711
        %v733 = vunpack.c.l.b16 %v717
        %v734 = vunpack.c.h.b16 %v717
        %v735 = vunpack.c.l.b16 %v718
        %v736 = vunpack.c.h.b16 %v718
        %v737 = vunpack.c.l.b16 %v719
        %v738 = vunpack.c.h.b16 %v719
        %v739 = vunpack.c.l.b16 %v720
        %v740 = vunpack.c.h.b16 %v720
        %v741 = vunpack.c.l.b16 %v721
        %v742 = vunpack.c.h.b16 %v721
        %v743 = vunpack.c.l.b16 %v722
        %v744 = vunpack.c.h.b16 %v722
        %v745 = vunpack.c.l.b16 %v723
        %v746 = vunpack.c.h.b16 %v723
        %v747 = vunpack.c.l.b16 %v724
        %v748 = vunpack.c.h.b16 %v724
        %v749 = vpack.c.b16 %v733, %v733
        %v750 = vpack.c.b16 %v734, %v734
        %v751 = vpack.c.b16 %v735, %v735
        %v752 = vpack.c.b16 %v736, %v736
        %v753 = vpack.c.b16 %v737, %v737
        %v754 = vpack.c.b16 %v738, %v738
        %v755 = vpack.c.b16 %v739, %v739
        %v756 = vpack.c.b16 %v740, %v740
        %v757 = vpack.c.b16 %v741, %v741
        %v758 = vpack.c.b16 %v742, %v742
        %v759 = vpack.c.b16 %v743, %v743
        %v760 = vpack.c.b16 %v744, %v744
        %v761 = vpack.c.b16 %v745, %v745
        %v762 = vpack.c.b16 %v746, %v746
        %v763 = vpack.c.b16 %v747, %v747
        %v764 = vpack.c.b16 %v748, %v748
        %781 = vst [vmem:[%s256] sm:$0xf] %v749
        %782 = vst [vmem:[%s256 + $0x4] sm:$0xf] %v750
        %783 = vst [vmem:[%s256 + $0x8] sm:$0xf] %v751
        %784 = vst [vmem:[%s256 + $0xc] sm:$0xf] %v752
        %785 = vst [vmem:[%s256 + $0x10] sm:$0xf] %v753
        %786 = vst [vmem:[%s256 + $0x14] sm:$0xf] %v754
        %787 = vst [vmem:[%s256 + $0x18] sm:$0xf] %v755
        %788 = vst [vmem:[%s256 + $0x1c] sm:$0xf] %v756
        %789 = vst [vmem:[%s256 + $0x20] sm:$0xf] %v757
        %790 = vst [vmem:[%s256 + $0x24] sm:$0xf] %v758
        %791 = vst [vmem:[%s256 + $0x28] sm:$0xf] %v759
        %792 = vst [vmem:[%s256 + $0x2c] sm:$0xf] %v760
        %793 = vst [vmem:[%s256 + $0x30] sm:$0xf] %v761
        %794 = vst [vmem:[%s256 + $0x34] sm:$0xf] %v762
        %795 = vst [vmem:[%s256 + $0x38] sm:$0xf] %v763
        %796 = vst [vmem:[%s256 + $0x3c] sm:$0xf] %v764
        %s797 = sand.u32 %s161, 1
        %s798 = scalar_lea.sflag [#allocation4], %s797
        %s799 = sand.u32 %s161, 1
        %s800 = smul.addr %s799, 64
        %s801 = scalar_lea.vmem [#allocation3], %s800
        // Predicated region
        $region45: #{tpu_custom_call.1} parent=39 // pred_check
          %p802 = pneg %p171
        $region46: #{tpu_custom_call.1} parent=39 // pred_check_branch
          %804 = sbr.rel (%p802) target = $region48
        $region47: #{tpu_custom_call.1} parent=39 // pred_region
          %s805 = smul.u32 16, %s23
          %s807 = ssub.s32 1024, 1024
          %808 = vsyncadd %s798, %s807
          %s809 = sadd.s32 %s24, %s805
          %s810 = smul.addr %s809, 64
          %s811 = scalar_lea.hbm %s5, %s810
          %s812 = sshll.u32 %s801, 4
          %s813 = int_to_ptr.vmem [resolvable:$true] %s812
          %818 = dma.vmem_to_hbm [thread:$0]  %s813, 1024, %s811, %s798, 64, 64, 4
        $region48: #{tpu_custom_call.1} parent=39 // pred_fallthru
          _
      $region40: #{tpu_custom_call.1} parent=5 // pred_fallthru
        _
      %p819 = scmp.le.s32.totalorder 2, %s14
      // Predicated region
      $region49: #{tpu_custom_call.1} parent=5 // pred_check
        %p820 = pneg %p819
      $region50: #{tpu_custom_call.1} parent=5 // pred_check_branch
        %822 = sbr.rel (%p820) target = $region52
      $region51: #{tpu_custom_call.1} parent=5 // pred_region
        %s823 = ssub.s32 %s14, 2
        // Predicated region
        $region53: #{tpu_custom_call.1} parent=51 // pred_check
          %p824 = pneg %p177
        $region54: #{tpu_custom_call.1} parent=51 // pred_check_branch
          %826 = sbr.rel (%p824) target = $region56
        $region55: #{tpu_custom_call.1} parent=51 // pred_region
          %s827 = sand.u32 %s162, 1
          %s828 = scalar_lea.sflag [#allocation4], %s827
          %s829 = sand.u32 %s162, 1
          %s830 = smul.addr %s829, 64
          %s831 = scalar_lea.vmem [#allocation3], %s830
          %832 = dma.done %s828, 1024
        $region56: #{tpu_custom_call.1} parent=51 // pred_fallthru
          _
      $region52: #{tpu_custom_call.1} parent=5 // pred_fallthru
        _
    $region6: #{tpu_custom_call.1} parent=1 // loop_footer
      %s18 = sadd.s32 1, %s14
    $region7: #{tpu_custom_call.1} parent=1 // loop_footer_branch
      %13 = sbr.rel target = $region3
    $region8: #{tpu_custom_call.1} parent=1 // loop_exit
      _
    %833 = vsyncpa [#allocation4], 1
    %s834 = scalar_lea.sflag [#allocation4], 1
    %835 = vsyncpa %s834, 1

// kernel: tpu_custom_call.1
$region0: #{tpu_custom_call.1}
  #allocation0 [shape = 'u32[]', space=smem, size = 0x4, offset = 0x4, fixed_abs, tag = 'smem constant byte address 0x4 - core index']
  #allocation1 [shape = 'u32[144,128]{1,0:T(1,128)}', space=vmem, size = 0x12000, scoped, tag = 'internal scratch']
  #allocation2 [shape = 'bf16[128,32]{1,0:T(16,128)(2,1)}', space=vmem, size = 0x8000, scoped, tag = 'scratch operand']
  %s0 = inlined_call_operand.vmem [shape: f32[384,32], index: 0, kind: input, shape index: {}]
  %s1 = inlined_call_operand.vmem [shape: f32[1,32], index: 1, kind: input, shape index: {}]
  %s2 = inlined_call_operand.vmem [shape: f32[1,32], index: 2, kind: input, shape index: {}]
  %s3 = inlined_call_operand.vmem [shape: bf16[32,128], index: 3, kind: input, shape index: {}]
  %s4 = inlined_call_operand.vmem [shape: f32[1,128], index: 4, kind: input, shape index: {}]
  %s5 = inlined_call_operand.hbm [shape: bf16[384,128], index: 5, kind: output, shape index: {}]
  %s6 = sld [smem:[#allocation0]]
  $region57: #{tpu_custom_call.1} parent=0
    _
  %s8 = ssub.s32 1, %s6
  %s9 = scalar_select 0, %s8, %s6
  $region1: #{tpu_custom_call.1} parent=0
    #allocation3 [shape = 'u8[65536]{0}', space=vmem, size = 0x10000, scoped, tag = 'output window, operand 0']
    #allocation4 [shape = 's32[2]{0}', space=sflag, size = 0x8, scoped, tag = 'scoped memory for tpu_custom_call.1']
    %10 = vsyncpa [#allocation4], 0
    %s11 = scalar_lea.sflag [#allocation4], 1
    %12 = vsyncpa %s11, 0
    loop: start=0, step=1, limit=5
    $region2: #{tpu_custom_call.1} parent=1 // loop_pre_header
      _
    $region3: #{tpu_custom_call.1} parent=1 // loop_header
      %s14 = sphi 0, %s18
      %p15 = scmp.ge.s32.totalorder %s14, 5
      %s21 = sphi 0, %s33
      %s22 = sphi 0, %s29
      %s23 = sphi 0, %s21
      %s24 = sphi 0, %s22
      %s25 = sphi 0, %s23
      %s26 = sphi 0, %s24
      %s36 = sphi 0, %s38
      %s39 = sphi 0, %s36
      %s40 = sphi 0, %s39
      %s56 = sphi 0, %s40
      %s60 = sphi 0, %s60
      %s62 = sphi 0, %s60
      %s63 = sphi 0, %s62
      %s77 = sphi 0, %s63
      %s81 = sphi 0, %s81
      %s83 = sphi 0, %s81
      %s84 = sphi 0, %s83
      %s98 = sphi 0, %s84
      %s104 = sphi 0, %s106
      %s107 = sphi 0, %s104
      %s108 = sphi 0, %s107
      %s124 = sphi 0, %s108
      %s130 = sphi 0, %s132
      %s133 = sphi 0, %s130
      %s134 = sphi 0, %s133
      %s150 = sphi 0, %s134
      %s158 = sphi 0, %s160
      %s161 = sphi 0, %s158
      %s162 = sphi 0, %s161
      %s178 = sphi 0, %s162
    $region4: #{tpu_custom_call.1} parent=1 // loop_header_branch
      %17 = sbr.rel (%p15) target = $region8
    $region5: #{tpu_custom_call.1} parent=1 // loop_body
      %s19 = ssub.s32 %s14, 1
      %s20 = ssub.s32 %s14, 2
      %s27 = sadd.s32 1, %s22
      %p28 = scmp.ge.s32.totalorder %s27, 1
      %s29 = scalar_select %p28, 0, %s27
      %s30 = sadd.s32 1, %s21
      %s31 = scalar_select %p28, %s30, %s21
      %p32 = scmp.ge.s32.totalorder %s31, 3
      %s33 = scalar_select %p32, 0, %s31
      %s34 = ssub.s32 %s21, %s33
      %p35 = scmp.eq.s32.totalorder %s34, 0
      %s37 = sadd.s32 %s36, 1
      %s38 = scalar_select %p35, %s36, %s37
      %p41 = pneg %p35
      %p42 = scmp.eq.s32.totalorder %s14, 2
      %p43 = por %p41, %p42
      %p44 = scmp.ne.s32.totalorder %s36, %s39
      %p45 = scmp.eq.s32.totalorder %s14, 0
      %p46 = por %p44, %p45
      %p47 = scmp.ne.s32.totalorder %s36, %s39
      %p48 = scmp.eq.s32.totalorder %s19, 2
      %p49 = por %p47, %p48
      %p50 = scmp.ne.s32.totalorder %s39, %s40
      %p51 = scmp.eq.s32.totalorder %s19, 0
      %p52 = por %p50, %p51
      %p53 = scmp.ne.s32.totalorder %s39, %s40
      %p54 = scmp.eq.s32.totalorder %s20, 2
      %p55 = por %p53, %p54
      %p57 = scmp.ne.s32.totalorder %s40, %s56
      %p58 = scmp.eq.s32.totalorder %s20, 0
      %p59 = por %p57, %p58
      %s61 = sadd.s32 %s60, 1
      %p64 = scmp.eq.s32.totalorder %s14, 2
      %p65 = scmp.ne.s32.totalorder %s60, %s62
      %p66 = scmp.eq.s32.totalorder %s14, 0
      %p67 = por %p65, %p66
      %p68 = scmp.ne.s32.totalorder %s60, %s62
      %p69 = scmp.eq.s32.totalorder %s19, 2
      %p70 = por %p68, %p69
      %p71 = scmp.ne.s32.totalorder %s62, %s63
      %p72 = scmp.eq.s32.totalorder %s19, 0
      %p73 = por %p71, %p72
      %p74 = scmp.ne.s32.totalorder %s62, %s63
      %p75 = scmp.eq.s32.totalorder %s20, 2
      %p76 = por %p74, %p75
      %p78 = scmp.ne.s32.totalorder %s63, %s77
      %p79 = scmp.eq.s32.totalorder %s20, 0
      %p80 = por %p78, %p79
      %s82 = sadd.s32 %s81, 1
      %p85 = scmp.eq.s32.totalorder %s14, 2
      %p86 = scmp.ne.s32.totalorder %s81, %s83
      %p87 = scmp.eq.s32.totalorder %s14, 0
      %p88 = por %p86, %p87
      %p89 = scmp.ne.s32.totalorder %s81, %s83
      %p90 = scmp.eq.s32.totalorder %s19, 2
      %p91 = por %p89, %p90
      %p92 = scmp.ne.s32.totalorder %s83, %s84
      %p93 = scmp.eq.s32.totalorder %s19, 0
      %p94 = por %p92, %p93
      %p95 = scmp.ne.s32.totalorder %s83, %s84
      %p96 = scmp.eq.s32.totalorder %s20, 2
      %p97 = por %p95, %p96
      %p99 = scmp.ne.s32.totalorder %s84, %s98
      %p100 = scmp.eq.s32.totalorder %s20, 0
      %p101 = por %p99, %p100
      %s102 = ssub.s32 %s22, %s29
      %p103 = scmp.eq.s32.totalorder %s102, 0
      %s105 = sadd.s32 %s104, 1
      %s106 = scalar_select %p103, %s104, %s105
      %p109 = pneg %p103
      %p110 = scmp.eq.s32.totalorder %s14, 2
      %p111 = por %p109, %p110
      %p112 = scmp.ne.s32.totalorder %s104, %s107
      %p113 = scmp.eq.s32.totalorder %s14, 0
      %p114 = por %p112, %p113
      %p115 = scmp.ne.s32.totalorder %s104, %s107
      %p116 = scmp.eq.s32.totalorder %s19, 2
      %p117 = por %p115, %p116
      %p118 = scmp.ne.s32.totalorder %s107, %s108
      %p119 = scmp.eq.s32.totalorder %s19, 0
      %p120 = por %p118, %p119
      %p121 = scmp.ne.s32.totalorder %s107, %s108
      %p122 = scmp.eq.s32.totalorder %s20, 2
      %p123 = por %p121, %p122
      %p125 = scmp.ne.s32.totalorder %s108, %s124
      %p126 = scmp.eq.s32.totalorder %s20, 0
      %p127 = por %p125, %p126
      %s128 = ssub.s32 %s22, %s29
      %p129 = scmp.eq.s32.totalorder %s128, 0
      %s131 = sadd.s32 %s130, 1
      %s132 = scalar_select %p129, %s130, %s131
      %p135 = pneg %p129
      %p136 = scmp.eq.s32.totalorder %s14, 2
      %p137 = por %p135, %p136
      %p138 = scmp.ne.s32.totalorder %s130, %s133
      %p139 = scmp.eq.s32.totalorder %s14, 0
      %p140 = por %p138, %p139
      %p141 = scmp.ne.s32.totalorder %s130, %s133
      %p142 = scmp.eq.s32.totalorder %s19, 2
      %p143 = por %p141, %p142
      %p144 = scmp.ne.s32.totalorder %s133, %s134
      %p145 = scmp.eq.s32.totalorder %s19, 0
      %p146 = por %p144, %p145
      %p147 = scmp.ne.s32.totalorder %s133, %s134
      %p148 = scmp.eq.s32.totalorder %s20, 2
      %p149 = por %p147, %p148
      %p151 = scmp.ne.s32.totalorder %s134, %s150
      %p152 = scmp.eq.s32.totalorder %s20, 0
      %p153 = por %p151, %p152
      %s154 = ssub.s32 %s21, %s33
      %s155 = ssub.s32 %s22, %s29
      %s156 = sor.u32 %s154, %s155
      %p157 = scmp.eq.s32.totalorder %s156, 0
      %s159 = sadd.s32 %s158, 1
      %s160 = scalar_select %p157, %s158, %s159
      %p163 = pneg %p157
      %p164 = scmp.eq.s32.totalorder %s14, 2
      %p165 = por %p163, %p164
      %p166 = scmp.ne.s32.totalorder %s158, %s161
      %p167 = scmp.eq.s32.totalorder %s14, 0
      %p168 = por %p166, %p167
      %p169 = scmp.ne.s32.totalorder %s158, %s161
      %p170 = scmp.eq.s32.totalorder %s19, 2
      %p171 = por %p169, %p170
      %p172 = scmp.ne.s32.totalorder %s161, %s162
      %p173 = scmp.eq.s32.totalorder %s19, 0
      %p174 = por %p172, %p173
      %p175 = scmp.ne.s32.totalorder %s161, %s162
      %p176 = scmp.eq.s32.totalorder %s20, 2
      %p177 = por %p175, %p176
      %p179 = scmp.ne.s32.totalorder %s162, %s178
      %p180 = scmp.eq.s32.totalorder %s20, 0
      %p181 = por %p179, %p180
      %p182 = scmp.le.s32.totalorder 1, %s14
      %p183 = scmp.lt.s32.totalorder %s14, 4
      %p184 = pnand %p182, %p183
      %p185 = pneg %p184
      // Predicated region
      $region9: #{tpu_custom_call.1} parent=5 // pred_check
        _
      $region10: #{tpu_custom_call.1} parent=5 // pred_check_branch
        %187 = sbr.rel (%p184) target = $region12
      $region11: #{tpu_custom_call.1} parent=5 // pred_region
        %s188 = ssub.s32 %s14, 1
        // Predicated region
        $region13: #{tpu_custom_call.1} parent=11 // pred_check
          %p189 = pneg %p73
        $region14: #{tpu_custom_call.1} parent=11 // pred_check_branch
          %191 = sbr.rel (%p189) target = $region16
        $region15: #{tpu_custom_call.1} parent=11 // pred_region
          _
        $region16: #{tpu_custom_call.1} parent=11 // pred_fallthru
          _
        // Predicated region
        $region17: #{tpu_custom_call.1} parent=11 // pred_check
          %p192 = pneg %p94
        $region18: #{tpu_custom_call.1} parent=11 // pred_check_branch
          %194 = sbr.rel (%p192) target = $region20
        $region19: #{tpu_custom_call.1} parent=11 // pred_region
          _
        $region20: #{tpu_custom_call.1} parent=11 // pred_fallthru
          _
        // Predicated region
        $region21: #{tpu_custom_call.1} parent=11 // pred_check
          %p195 = pneg %p120
        $region22: #{tpu_custom_call.1} parent=11 // pred_check_branch
          %197 = sbr.rel (%p195) target = $region24
        $region23: #{tpu_custom_call.1} parent=11 // pred_region
          %p198 = scmp.lt.s32.totalorder %s24, 0
          %s199 = scalar_select %p198, %s24, 0
          %s200 = smul.addr %s199, 4
          %s201 = scalar_lea.vmem %s3, %s200
        $region24: #{tpu_custom_call.1} parent=11 // pred_fallthru
          _
        // Predicated region
        $region25: #{tpu_custom_call.1} parent=11 // pred_check
          %p202 = pneg %p146
        $region26: #{tpu_custom_call.1} parent=11 // pred_check_branch
          %204 = sbr.rel (%p202) target = $region28
        $region27: #{tpu_custom_call.1} parent=11 // pred_region
          %p205 = scmp.lt.s32.totalorder %s24, 0
          %s206 = scalar_select %p205, %s24, 0
          %s207 = scalar_lea.vmem %s4, %s206
        $region28: #{tpu_custom_call.1} parent=11 // pred_fallthru
          _
      $region12: #{tpu_custom_call.1} parent=5 // pred_fallthru
        _
      %p208 = scmp.lt.s32.totalorder %s14, 3
      // Predicated region
      $region29: #{tpu_custom_call.1} parent=5 // pred_check
        %p209 = pneg %p208
      $region30: #{tpu_custom_call.1} parent=5 // pred_check_branch
        %211 = sbr.rel (%p209) target = $region32
      $region31: #{tpu_custom_call.1} parent=5 // pred_region
        // Predicated region
        $region33: #{tpu_custom_call.1} parent=31 // pred_check
          %p212 = pneg %p46
        $region34: #{tpu_custom_call.1} parent=31 // pred_check_branch
          %214 = sbr.rel (%p212) target = $region36
        $region35: #{tpu_custom_call.1} parent=31 // pred_region
          %s215 = smul.u32 16, %s21
          %p216 = scmp.lt.s32.totalorder %s215, 47
          %s217 = scalar_select %p216, %s215, 47
          %s218 = smul.addr %s217, 8
          %s219 = scalar_lea.vmem %s0, %s218
          %s220 = smul.u32 16, %s21
        $region36: #{tpu_custom_call.1} parent=31 // pred_fallthru
          _
      $region32: #{tpu_custom_call.1} parent=5 // pred_fallthru
        _
      %p221 = scmp.le.s32.totalorder 1, %s14
      %p222 = scmp.lt.s32.totalorder %s14, 4
      %p223 = pnand %p221, %p222
      %p224 = pneg %p223
      // Predicated region
      $region37: #{tpu_custom_call.1} parent=5 // pred_check
        _
      $region38: #{tpu_custom_call.1} parent=5 // pred_check_branch
        %226 = sbr.rel (%p223) target = $region40
      $region39: #{tpu_custom_call.1} parent=5 // pred_region
        %s227 = ssub.s32 %s14, 1
        %s228 = smul.u32 16, %s23
        %p229 = scmp.lt.s32.totalorder %s228, 47
        %s230 = scalar_select %p229, %s228, 47
        %s231 = smul.addr %s230, 8
        %s232 = scalar_lea.vmem %s0, %s231
        %p233 = pneg %p52
        %p234 = pneg %p49
        %p235 = pneg %p73
        %p236 = pneg %p70
        %p237 = pneg %p94
        %p238 = pneg %p91
        %p239 = scmp.lt.s32.totalorder %s24, 0
        %s240 = scalar_select %p239, %s24, 0
        %s241 = smul.addr %s240, 4
        %s242 = scalar_lea.vmem %s3, %s241
        %p243 = pneg %p120
        %p244 = pneg %p117
        %p245 = scmp.lt.s32.totalorder %s24, 0
        %s246 = scalar_select %p245, %s24, 0
        %s247 = scalar_lea.vmem %s4, %s246
        %p248 = pneg %p146
        %p249 = pneg %p143
        %p250 = pneg %p174
        %p251 = pneg %p171
        %s252 = sand.u32 %s161, 1
        %s253 = scalar_lea.sflag [#allocation4], %s252
        %s254 = sand.u32 %s161, 1
        %s255 = smul.addr %s254, 64
        %s256 = scalar_lea.vmem [#allocation3], %s255
        %s257 = smul.u32 16, %s23
        %p258 = scmp.lt.s32.totalorder %s257, 47
        %s259 = scalar_select %p258, %s257, 47
        %s260 = smul.addr %s259, 8
        %s261 = scalar_lea.vmem %s0, %s260
        %s262 = smul.u32 16, %s23
        %p263 = scmp.lt.s32.totalorder %s24, 0
        %s264 = scalar_select %p263, %s24, 0
        %s265 = smul.addr %s264, 4
        %s266 = scalar_lea.vmem %s3, %s265
        %p267 = scmp.lt.s32.totalorder %s24, 0
        %s268 = scalar_select %p267, %s24, 0
        %s269 = scalar_lea.vmem %s4, %s268
        %s270 = smul.u32 16, %s23
        %p272 = scmp.eq.s32.totalorder %s24, 0
        // Predicated region
        $region41: #{tpu_custom_call.1} parent=39 // pred_check
          %p273 = pneg %p272
        $region42: #{tpu_custom_call.1} parent=39 // pred_check_branch
          %275 = sbr.rel (%p273) target = $region44
        $region43: #{tpu_custom_call.1} parent=39 // pred_region
          %v276 = vld [vmem:[%s261] sm:$0xff]
          %v277 = vld [vmem:[%s261 + $0x8] sm:$0xff]
          %v278 = vld [vmem:[%s261 + $0x10] sm:$0xff]
          %v279 = vld [vmem:[%s261 + $0x18] sm:$0xff]
          %v280 = vld [vmem:[%s261 + $0x20] sm:$0xff]
          %v281 = vld [vmem:[%s261 + $0x28] sm:$0xff]
          %v282 = vld [vmem:[%s261 + $0x30] sm:$0xff]
          %v283 = vld [vmem:[%s261 + $0x38] sm:$0xff]
          %v284 = vld [vmem:[%s261 + $0x40] sm:$0xff]
          %v285 = vld [vmem:[%s261 + $0x48] sm:$0xff]
          %v286 = vld [vmem:[%s261 + $0x50] sm:$0xff]
          %v287 = vld [vmem:[%s261 + $0x58] sm:$0xff]
          %v288 = vld [vmem:[%s261 + $0x60] sm:$0xff]
          %v289 = vld [vmem:[%s261 + $0x68] sm:$0xff]
          %v290 = vld [vmem:[%s261 + $0x70] sm:$0xff]
          %v291 = vld [vmem:[%s261 + $0x78] sm:$0xff]
          %vm292 = vcmask 261120
          %v293 = vsel %vm292, %v276, 0.0
          %294 = vadd.xlane.f32.xlu0 %v293
          %v295 = vpop.xlane.xlu0 %294
          %v296 = vsel %vm292, %v277, 0.0
          %297 = vadd.xlane.f32.xlu0 %v296
          %v298 = vpop.xlane.xlu0 %297
          %v299 = vsel %vm292, %v278, 0.0
          %300 = vadd.xlane.f32.xlu0 %v299
          %v301 = vpop.xlane.xlu0 %300
          %v302 = vsel %vm292, %v279, 0.0
          %303 = vadd.xlane.f32.xlu0 %v302
          %v304 = vpop.xlane.xlu0 %303
          %v305 = vsel %vm292, %v280, 0.0
          %306 = vadd.xlane.f32.xlu0 %v305
          %v307 = vpop.xlane.xlu0 %306
          %v308 = vsel %vm292, %v281, 0.0
          %309 = vadd.xlane.f32.xlu0 %v308
          %v310 = vpop.xlane.xlu0 %309
          %v311 = vsel %vm292, %v282, 0.0
          %312 = vadd.xlane.f32.xlu0 %v311
          %v313 = vpop.xlane.xlu0 %312
          %v314 = vsel %vm292, %v283, 0.0
          %315 = vadd.xlane.f32.xlu0 %v314
          %v316 = vpop.xlane.xlu0 %315
          %v317 = vsel %vm292, %v284, 0.0
          %318 = vadd.xlane.f32.xlu0 %v317
          %v319 = vpop.xlane.xlu0 %318
          %v320 = vsel %vm292, %v285, 0.0
          %321 = vadd.xlane.f32.xlu0 %v320
          %v322 = vpop.xlane.xlu0 %321
          %v323 = vsel %vm292, %v286, 0.0
          %324 = vadd.xlane.f32.xlu0 %v323
          %v325 = vpop.xlane.xlu0 %324
          %v326 = vsel %vm292, %v287, 0.0
          %327 = vadd.xlane.f32.xlu0 %v326
          %v328 = vpop.xlane.xlu0 %327
          %v329 = vsel %vm292, %v288, 0.0
          %330 = vadd.xlane.f32.xlu0 %v329
          %v331 = vpop.xlane.xlu0 %330
          %v332 = vsel %vm292, %v289, 0.0
          %333 = vadd.xlane.f32.xlu0 %v332
          %v334 = vpop.xlane.xlu0 %333
          %v335 = vsel %vm292, %v290, 0.0
          %336 = vadd.xlane.f32.xlu0 %v335
          %v337 = vpop.xlane.xlu0 %336
          %v338 = vsel %vm292, %v291, 0.0
          %339 = vadd.xlane.f32.xlu0 %v338
          %v340 = vpop.xlane.xlu0 %339
          %v341 = vrcp.pop 32.0
          %v342 = vmul.f32 %v295, %v341
          %v343 = vmul.f32 %v298, %v341
          %v344 = vmul.f32 %v301, %v341
          %v345 = vmul.f32 %v304, %v341
          %v346 = vmul.f32 %v307, %v341
          %v347 = vmul.f32 %v310, %v341
          %v348 = vmul.f32 %v313, %v341
          %v349 = vmul.f32 %v316, %v341
          %v350 = vmul.f32 %v319, %v341
          %v351 = vmul.f32 %v322, %v341
          %v352 = vmul.f32 %v325, %v341
          %v353 = vmul.f32 %v328, %v341
          %v354 = vmul.f32 %v331, %v341
          %v355 = vmul.f32 %v334, %v341
          %v356 = vmul.f32 %v337, %v341
          %v357 = vmul.f32 %v340, %v341
          %v358 = vsub.f32 %v276, %v342
          %v359 = vsub.f32 %v277, %v343
          %v360 = vsub.f32 %v278, %v344
          %v361 = vsub.f32 %v279, %v345
          %v362 = vsub.f32 %v280, %v346
          %v363 = vsub.f32 %v281, %v347
          %v364 = vsub.f32 %v282, %v348
          %v365 = vsub.f32 %v283, %v349
          %v366 = vsub.f32 %v284, %v350
          %v367 = vsub.f32 %v285, %v351
          %v368 = vsub.f32 %v286, %v352
          %v369 = vsub.f32 %v287, %v353
          %v370 = vsub.f32 %v288, %v354
          %v371 = vsub.f32 %v289, %v355
          %v372 = vsub.f32 %v290, %v356
          %v373 = vsub.f32 %v291, %v357
          %v374 = vmul.f32 %v358, %v358
          %v375 = vmul.f32 %v359, %v359
          %v376 = vmul.f32 %v360, %v360
          %v377 = vmul.f32 %v361, %v361
          %v378 = vmul.f32 %v362, %v362
          %v379 = vmul.f32 %v363, %v363
          %v380 = vmul.f32 %v364, %v364
          %v381 = vmul.f32 %v365, %v365
          %v382 = vmul.f32 %v366, %v366
          %v383 = vmul.f32 %v367, %v367
          %v384 = vmul.f32 %v368, %v368
          %v385 = vmul.f32 %v369, %v369
          %v386 = vmul.f32 %v370, %v370
          %v387 = vmul.f32 %v371, %v371
          %v388 = vmul.f32 %v372, %v372
          %v389 = vmul.f32 %v373, %v373
          %v390 = vsel %vm292, %v374, 0.0
          %391 = vadd.xlane.f32.xlu0 %v390
          %v392 = vpop.xlane.xlu0 %391
          %v393 = vsel %vm292, %v375, 0.0
          %394 = vadd.xlane.f32.xlu0 %v393
          %v395 = vpop.xlane.xlu0 %394
          %v396 = vsel %vm292, %v376, 0.0
          %397 = vadd.xlane.f32.xlu0 %v396
          %v398 = vpop.xlane.xlu0 %397
          %v399 = vsel %vm292, %v377, 0.0
          %400 = vadd.xlane.f32.xlu0 %v399
          %v401 = vpop.xlane.xlu0 %400
          %v402 = vsel %vm292, %v378, 0.0
          %403 = vadd.xlane.f32.xlu0 %v402
          %v404 = vpop.xlane.xlu0 %403
          %v405 = vsel %vm292, %v379, 0.0
          %406 = vadd.xlane.f32.xlu0 %v405
          %v407 = vpop.xlane.xlu0 %406
          %v408 = vsel %vm292, %v380, 0.0
          %409 = vadd.xlane.f32.xlu0 %v408
          %v410 = vpop.xlane.xlu0 %409
          %v411 = vsel %vm292, %v381, 0.0
          %412 = vadd.xlane.f32.xlu0 %v411
          %v413 = vpop.xlane.xlu0 %412
          %v414 = vsel %vm292, %v382, 0.0
          %415 = vadd.xlane.f32.xlu0 %v414
          %v416 = vpop.xlane.xlu0 %415
          %v417 = vsel %vm292, %v383, 0.0
          %418 = vadd.xlane.f32.xlu0 %v417
          %v419 = vpop.xlane.xlu0 %418
          %v420 = vsel %vm292, %v384, 0.0
          %421 = vadd.xlane.f32.xlu0 %v420
          %v422 = vpop.xlane.xlu0 %421
          %v423 = vsel %vm292, %v385, 0.0
          %424 = vadd.xlane.f32.xlu0 %v423
          %v425 = vpop.xlane.xlu0 %424
          %v426 = vsel %vm292, %v386, 0.0
          %427 = vadd.xlane.f32.xlu0 %v426
          %v428 = vpop.xlane.xlu0 %427
          %v429 = vsel %vm292, %v387, 0.0
          %430 = vadd.xlane.f32.xlu0 %v429
          %v431 = vpop.xlane.xlu0 %430
          %v432 = vsel %vm292, %v388, 0.0
          %433 = vadd.xlane.f32.xlu0 %v432
          %v434 = vpop.xlane.xlu0 %433
          %v435 = vsel %vm292, %v389, 0.0
          %436 = vadd.xlane.f32.xlu0 %v435
          %v437 = vpop.xlane.xlu0 %436
          %v438 = vmul.f32 %v392, %v341
          %v439 = vmul.f32 %v395, %v341
          %v440 = vmul.f32 %v398, %v341
          %v441 = vmul.f32 %v401, %v341
          %v442 = vmul.f32 %v404, %v341
          %v443 = vmul.f32 %v407, %v341
          %v444 = vmul.f32 %v410, %v341
          %v445 = vmul.f32 %v413, %v341
          %v446 = vmul.f32 %v416, %v341
          %v447 = vmul.f32 %v419, %v341
          %v448 = vmul.f32 %v422, %v341
          %v449 = vmul.f32 %v425, %v341
          %v450 = vmul.f32 %v428, %v341
          %v451 = vmul.f32 %v431, %v341
          %v452 = vmul.f32 %v434, %v341
          %v453 = vmul.f32 %v437, %v341
          %v454 = vadd.f32 %v438, 1e-12
          %v455 = vadd.f32 %v439, 1e-12
          %v456 = vadd.f32 %v440, 1e-12
          %v457 = vadd.f32 %v441, 1e-12
          %v458 = vadd.f32 %v442, 1e-12
          %v459 = vadd.f32 %v443, 1e-12
          %v460 = vadd.f32 %v444, 1e-12
          %v461 = vadd.f32 %v445, 1e-12
          %v462 = vadd.f32 %v446, 1e-12
          %v463 = vadd.f32 %v447, 1e-12
          %v464 = vadd.f32 %v448, 1e-12
          %v465 = vadd.f32 %v449, 1e-12
          %v466 = vadd.f32 %v450, 1e-12
          %v467 = vadd.f32 %v451, 1e-12
          %v468 = vadd.f32 %v452, 1e-12
          %v469 = vadd.f32 %v453, 1e-12
          %v470 = vrsqrt.pop %v454
          %v471 = vrsqrt.pop %v455
          %v472 = vrsqrt.pop %v456
          %v473 = vrsqrt.pop %v457
          %v474 = vrsqrt.pop %v458
          %v475 = vrsqrt.pop %v459
          %v476 = vrsqrt.pop %v460
          %v477 = vrsqrt.pop %v461
          %v478 = vrsqrt.pop %v462
          %v479 = vrsqrt.pop %v463
          %v480 = vrsqrt.pop %v464
          %v481 = vrsqrt.pop %v465
          %v482 = vrsqrt.pop %v466
          %v483 = vrsqrt.pop %v467
          %v484 = vrsqrt.pop %v468
          %v485 = vrsqrt.pop %v469
          %v486 = vmul.f32 %v358, %v470
          %v487 = vmul.f32 %v359, %v471
          %v488 = vmul.f32 %v360, %v472
          %v489 = vmul.f32 %v361, %v473
          %v490 = vmul.f32 %v362, %v474
          %v491 = vmul.f32 %v363, %v475
          %v492 = vmul.f32 %v364, %v476
          %v493 = vmul.f32 %v365, %v477
          %v494 = vmul.f32 %v366, %v478
          %v495 = vmul.f32 %v367, %v479
          %v496 = vmul.f32 %v368, %v480
          %v497 = vmul.f32 %v369, %v481
          %v498 = vmul.f32 %v370, %v482
          %v499 = vmul.f32 %v371, %v483
          %v500 = vmul.f32 %v372, %v484
          %v501 = vmul.f32 %v373, %v485
          %v502 = vld [vmem:[%s1] sm:$0x1]
          %v504 = vlaneseq
          %v505 = vshrl.u32 %v504, 7
          %v506 = vsub.s32 0, %v505
          %v507 = vrot.slane %v502, %v506
          %v509 = vmul.f32 %v486, %v507
          %v510 = vmul.f32 %v487, %v507
          %v511 = vmul.f32 %v488, %v507
          %v512 = vmul.f32 %v489, %v507
          %v513 = vmul.f32 %v490, %v507
          %v514 = vmul.f32 %v491, %v507
          %v515 = vmul.f32 %v492, %v507
          %v516 = vmul.f32 %v493, %v507
          %v517 = vmul.f32 %v494, %v507
          %v518 = vmul.f32 %v495, %v507
          %v519 = vmul.f32 %v496, %v507
          %v520 = vmul.f32 %v497, %v507
          %v521 = vmul.f32 %v498, %v507
          %v522 = vmul.f32 %v499, %v507
          %v523 = vmul.f32 %v500, %v507
          %v524 = vmul.f32 %v501, %v507
          %v525 = vld [vmem:[%s2] sm:$0x1]
          %v527 = vlaneseq
          %v528 = vshrl.u32 %v527, 7
          %v529 = vsub.s32 0, %v528
          %v530 = vrot.slane %v525, %v529
          %v532 = vadd.f32 %v509, %v530
          %v533 = vadd.f32 %v510, %v530
          %v534 = vadd.f32 %v511, %v530
          %v535 = vadd.f32 %v512, %v530
          %v536 = vadd.f32 %v513, %v530
          %v537 = vadd.f32 %v514, %v530
          %v538 = vadd.f32 %v515, %v530
          %v539 = vadd.f32 %v516, %v530
          %v540 = vadd.f32 %v517, %v530
          %v541 = vadd.f32 %v518, %v530
          %v542 = vadd.f32 %v519, %v530
          %v543 = vadd.f32 %v520, %v530
          %v544 = vadd.f32 %v521, %v530
          %v545 = vadd.f32 %v522, %v530
          %v546 = vadd.f32 %v523, %v530
          %v547 = vadd.f32 %v524, %v530
          %v548 = vpack.c.bf16 %v533, %v532
          %v549 = vpack.c.bf16 %v535, %v534
          %v550 = vpack.c.bf16 %v537, %v536
          %v551 = vpack.c.bf16 %v539, %v538
          %v552 = vpack.c.bf16 %v541, %v540
          %v553 = vpack.c.bf16 %v543, %v542
          %v554 = vpack.c.bf16 %v545, %v544
          %v555 = vpack.c.bf16 %v547, %v546
          %556 = vst.msk [vmem:[#allocation2] sm:$0xff] %vm292, %v548
          %557 = vst.msk [vmem:[#allocation2 + $0x8] sm:$0xff] %vm292, %v549
          %558 = vst.msk [vmem:[#allocation2 + $0x10] sm:$0xff] %vm292, %v550
          %559 = vst.msk [vmem:[#allocation2 + $0x18] sm:$0xff] %vm292, %v551
          %560 = vst.msk [vmem:[#allocation2 + $0x20] sm:$0xff] %vm292, %v552
          %561 = vst.msk [vmem:[#allocation2 + $0x28] sm:$0xff] %vm292, %v553
          %562 = vst.msk [vmem:[#allocation2 + $0x30] sm:$0xff] %vm292, %v554
          %563 = vst.msk [vmem:[#allocation2 + $0x38] sm:$0xff] %vm292, %v555
        $region44: #{tpu_custom_call.1} parent=39 // pred_fallthru
          _
        %v564 = vld [vmem:[#allocation2] sm:$0xff]
        %v565 = vld [vmem:[#allocation2 + $0x8] sm:$0xff]
        %v566 = vld [vmem:[#allocation2 + $0x10] sm:$0xff]
        %v567 = vld [vmem:[#allocation2 + $0x18] sm:$0xff]
        %v568 = vld [vmem:[#allocation2 + $0x20] sm:$0xff]
        %v569 = vld [vmem:[#allocation2 + $0x28] sm:$0xff]
        %v570 = vld [vmem:[#allocation2 + $0x30] sm:$0xff]
        %v571 = vld [vmem:[#allocation2 + $0x38] sm:$0xff]
        %v572 = vld [vmem:[%s266] sm:$0xf]
        %v573 = vld [vmem:[%s266 + $0x4] sm:$0xf]
        %v574 = vld [vmem:[%s266 + $0x8] sm:$0xf]
        %v575 = vld [vmem:[%s266 + $0xc] sm:$0xf]
        %v576 = vld [vmem:[%s269] sm:$0x1]
        %v578 = vlaneseq
        %v579 = vshrl.u32 %v578, 7
        %v580 = vsub.s32 0, %v579
        %v581 = vrot.slane %v576, %v580
        %v587 = vunpack.c.l.b16 %v572
        %v588 = vunpack.c.l.b16 %v573
        %v589 = vunpack.c.l.b16 %v574
        %v590 = vunpack.c.l.b16 %v575
        %v591 = vpack.c.b16 %v588, %v587
        %v592 = vpack.c.b16 %v590, %v589
        %vm595 = vcmask 261120
        %v597 = vsel %vm595, %v564, 0
        %v600 = vsel %vm595, %v565, 0
        %v603 = vsel %vm595, %v566, 0
        %v606 = vsel %vm595, %v567, 0
        %v609 = vsel %vm595, %v568, 0
        %v612 = vsel %vm595, %v569, 0
        %v615 = vsel %vm595, %v570, 0
        %v618 = vsel %vm595, %v571, 0
        %620 = vmatprep.subr.bf16.mxu0 0
        %621 = vmatpush1.bf16.msra.mxu0 %v591
        %622 = vmatprep.subr.bf16.mxu0 0
        %623 = vmatpush1.bf16.msra.mxu0 %v592
        %624 = vmatprep.subr.bf16.mxu0 0
        %625 = vmatpush1.bf16.msra.mxu0 0
        %626 = vmatprep.subr.bf16.mxu0 0
        %627 = vmatpush1.bf16.msra.mxu0 0
        %628 = vmatprep.subr.bf16.mxu0 0
        %629 = vmatpush1.bf16.msra.mxu0 0
        %630 = vmatprep.subr.bf16.mxu0 0
        %631 = vmatpush1.bf16.msra.mxu0 0
        %632 = vmatprep.subr.bf16.mxu0 0
        %633 = vmatpush1.bf16.msra.mxu0 0
        %634 = vmatprep.subr.bf16.mxu0 0
        %635 = vmatpush1.bf16.msra.mxu0 0
        %636 = vmatprep.subr.bf16.mxu0 0
        %637 = vmatpush1.bf16.msra.mxu0 0
        %638 = vmatprep.subr.bf16.mxu0 0
        %639 = vmatpush1.bf16.msra.mxu0 0
        %640 = vmatprep.subr.bf16.mxu0 0
        %641 = vmatpush1.bf16.msra.mxu0 0
        %642 = vmatprep.subr.bf16.mxu0 0
        %643 = vmatpush1.bf16.msra.mxu0 0
        %644 = vmatprep.subr.bf16.mxu0 0
        %645 = vmatpush1.bf16.msra.mxu0 0
        %646 = vmatprep.subr.bf16.mxu0 0
        %647 = vmatpush1.bf16.msra.mxu0 0
        %648 = vmatprep.subr.bf16.mxu0 0
        %649 = vmatpush1.bf16.msra.mxu0 0
        %650 = vmatprep.subr.bf16.mxu0 0
        %651 = vmatpush1.bf16.msra.mxu0 0
        %652 = vmatprep.mubr.bf16.mxu0 0
        %653 = vmatmul.mubr.bf16.gmra.mrb[0].mxu0 %v597
        %v654 = vpop.f32.mrb[0].mxu0
        %v655 = vadd.f32 %v581, %v654
        %v656 = vpop.f32.mrb[0].mxu0
        %v657 = vpop.f32.mrb[0].mxu0
        %v658 = vadd.f32 %v581, %v657
        %v659 = vpop.f32.mrb[0].mxu0
        %660 = vmatprep.mubr.bf16.mxu0 0
        %661 = vmatmul.mubr.bf16.gmra.mrb[0].mxu0 %v600
        %v662 = vpop.f32.mrb[0].mxu0
        %v663 = vadd.f32 %v581, %v662
        %v664 = vpop.f32.mrb[0].mxu0
        %v665 = vpop.f32.mrb[0].mxu0
        %v666 = vadd.f32 %v581, %v665
        %v667 = vpop.f32.mrb[0].mxu0
        %668 = vmatprep.mubr.bf16.mxu0 0
        %669 = vmatmul.mubr.bf16.gmra.mrb[0].mxu0 %v603
        %v670 = vpop.f32.mrb[0].mxu0
        %v671 = vadd.f32 %v581, %v670
        %v672 = vpop.f32.mrb[0].mxu0
        %v673 = vpop.f32.mrb[0].mxu0
        %v674 = vadd.f32 %v581, %v673
        %v675 = vpop.f32.mrb[0].mxu0
        %676 = vmatprep.mubr.bf16.mxu0 0
        %677 = vmatmul.mubr.bf16.gmra.mrb[0].mxu0 %v606
        %v678 = vpop.f32.mrb[0].mxu0
        %v679 = vadd.f32 %v581, %v678
        %v680 = vpop.f32.mrb[0].mxu0
        %v681 = vpop.f32.mrb[0].mxu0
        %v682 = vadd.f32 %v581, %v681
        %v683 = vpop.f32.mrb[0].mxu0
        %684 = vmatprep.mubr.bf16.mxu0 0
        %685 = vmatmul.mubr.bf16.gmra.mrb[0].mxu0 %v609
        %v686 = vpop.f32.mrb[0].mxu0
        %v687 = vadd.f32 %v581, %v686
        %v688 = vpop.f32.mrb[0].mxu0
        %v689 = vpop.f32.mrb[0].mxu0
        %v690 = vadd.f32 %v581, %v689
        %v691 = vpop.f32.mrb[0].mxu0
        %692 = vmatprep.mubr.bf16.mxu0 0
        %693 = vmatmul.mubr.bf16.gmra.mrb[0].mxu0 %v612
        %v694 = vpop.f32.mrb[0].mxu0
        %v695 = vadd.f32 %v581, %v694
        %v696 = vpop.f32.mrb[0].mxu0
        %v697 = vpop.f32.mrb[0].mxu0
        %v698 = vadd.f32 %v581, %v697
        %v699 = vpop.f32.mrb[0].mxu0
        %700 = vmatprep.mubr.bf16.mxu0 0
        %701 = vmatmul.mubr.bf16.gmra.mrb[0].mxu0 %v615
        %v702 = vpop.f32.mrb[0].mxu0
        %v703 = vadd.f32 %v581, %v702
        %v704 = vpop.f32.mrb[0].mxu0
        %v705 = vpop.f32.mrb[0].mxu0
        %v706 = vadd.f32 %v581, %v705
        %v707 = vpop.f32.mrb[0].mxu0
        %708 = vmatprep.mubr.bf16.mxu0 0
        %709 = vmatmul.mubr.bf16.gmra.mrb[0].mxu0 %v618
        %v710 = vpop.f32.mrb[0].mxu0
        %v711 = vadd.f32 %v581, %v710
        %v712 = vpop.f32.mrb[0].mxu0
        %v713 = vpop.f32.mrb[0].mxu0
        %v714 = vadd.f32 %v581, %v713
        %v715 = vpop.f32.mrb[0].mxu0
        %716 = vdwg.mxu0
        %v717 = vpack.c.bf16 %v658, %v655
        %v718 = vpack.c.bf16 %v666, %v663
        %v719 = vpack.c.bf16 %v674, %v671
        %v720 = vpack.c.bf16 %v682, %v679
        %v721 = vpack.c.bf16 %v690, %v687
        %v722 = vpack.c.bf16 %v698, %v695
        %v723 = vpack.c.bf16 %v706, %v703
        %v724 = vpack.c.bf16 %v714, %v711
        %v733 = vunpack.c.l.b16 %v717
        %v734 = vunpack.c.h.b16 %v717
        %v735 = vunpack.c.l.b16 %v718
        %v736 = vunpack.c.h.b16 %v718
        %v737 = vunpack.c.l.b16 %v719
        %v738 = vunpack.c.h.b16 %v719
        %v739 = vunpack.c.l.b16 %v720
        %v740 = vunpack.c.h.b16 %v720
        %v741 = vunpack.c.l.b16 %v721
        %v742 = vunpack.c.h.b16 %v721
        %v743 = vunpack.c.l.b16 %v722
        %v744 = vunpack.c.h.b16 %v722
        %v745 = vunpack.c.l.b16 %v723
        %v746 = vunpack.c.h.b16 %v723
        %v747 = vunpack.c.l.b16 %v724
        %v748 = vunpack.c.h.b16 %v724
        %v749 = vpack.c.b16 %v733, %v733
        %v750 = vpack.c.b16 %v734, %v734
        %v751 = vpack.c.b16 %v735, %v735
        %v752 = vpack.c.b16 %v736, %v736
        %v753 = vpack.c.b16 %v737, %v737
        %v754 = vpack.c.b16 %v738, %v738
        %v755 = vpack.c.b16 %v739, %v739
        %v756 = vpack.c.b16 %v740, %v740
        %v757 = vpack.c.b16 %v741, %v741
        %v758 = vpack.c.b16 %v742, %v742
        %v759 = vpack.c.b16 %v743, %v743
        %v760 = vpack.c.b16 %v744, %v744
        %v761 = vpack.c.b16 %v745, %v745
        %v762 = vpack.c.b16 %v746, %v746
        %v763 = vpack.c.b16 %v747, %v747
        %v764 = vpack.c.b16 %v748, %v748
        %781 = vst [vmem:[%s256] sm:$0xf] %v749
        %782 = vst [vmem:[%s256 + $0x4] sm:$0xf] %v750
        %783 = vst [vmem:[%s256 + $0x8] sm:$0xf] %v751
        %784 = vst [vmem:[%s256 + $0xc] sm:$0xf] %v752
        %785 = vst [vmem:[%s256 + $0x10] sm:$0xf] %v753
        %786 = vst [vmem:[%s256 + $0x14] sm:$0xf] %v754
        %787 = vst [vmem:[%s256 + $0x18] sm:$0xf] %v755
        %788 = vst [vmem:[%s256 + $0x1c] sm:$0xf] %v756
        %789 = vst [vmem:[%s256 + $0x20] sm:$0xf] %v757
        %790 = vst [vmem:[%s256 + $0x24] sm:$0xf] %v758
        %791 = vst [vmem:[%s256 + $0x28] sm:$0xf] %v759
        %792 = vst [vmem:[%s256 + $0x2c] sm:$0xf] %v760
        %793 = vst [vmem:[%s256 + $0x30] sm:$0xf] %v761
        %794 = vst [vmem:[%s256 + $0x34] sm:$0xf] %v762
        %795 = vst [vmem:[%s256 + $0x38] sm:$0xf] %v763
        %796 = vst [vmem:[%s256 + $0x3c] sm:$0xf] %v764
        %s797 = sand.u32 %s161, 1
        %s798 = scalar_lea.sflag [#allocation4], %s797
        %s799 = sand.u32 %s161, 1
        %s800 = smul.addr %s799, 64
        %s801 = scalar_lea.vmem [#allocation3], %s800
        // Predicated region
        $region45: #{tpu_custom_call.1} parent=39 // pred_check
          %p802 = pneg %p171
        $region46: #{tpu_custom_call.1} parent=39 // pred_check_branch
          %804 = sbr.rel (%p802) target = $region48
        $region47: #{tpu_custom_call.1} parent=39 // pred_region
          %s805 = smul.u32 16, %s23
          %s807 = ssub.s32 1024, 1024
          %808 = vsyncadd %s798, %s807
          %s809 = sadd.s32 %s24, %s805
          %s810 = smul.addr %s809, 64
          %s811 = scalar_lea.hbm %s5, %s810
          %s812 = sshll.u32 %s801, 4
          %s813 = int_to_ptr.vmem [resolvable:$true] %s812
          %818 = dma.vmem_to_hbm [thread:$0]  %s813, 1024, %s811, %s798, 64, 64, 4
        $region48: #{tpu_custom_call.1} parent=39 // pred_fallthru
          _
      $region40: #{tpu_custom_call.1} parent=5 // pred_fallthru
        _
      %p819 = scmp.le.s32.totalorder 2, %s14
      // Predicated region
      $region49: #{tpu_custom_call.1} parent=5 // pred_check
        %p820 = pneg %p819
      $region50: #{tpu_custom_call.1} parent=5 // pred_check_branch
        %822 = sbr.rel (%p820) target = $region52
      $region51: #{tpu_custom_call.1} parent=5 // pred_region
        %s823 = ssub.s32 %s14, 2
        // Predicated region
        $region53: #{tpu_custom_call.1} parent=51 // pred_check
          %p824 = pneg %p177
        $region54: #{tpu_custom_call.1} parent=51 // pred_check_branch
          %826 = sbr.rel (%p824) target = $region56
        $region55: #{tpu_custom_call.1} parent=51 // pred_region
          %s827 = sand.u32 %s162, 1
          %s828 = scalar_lea.sflag [#allocation4], %s827
          %s829 = sand.u32 %s162, 1
          %s830 = smul.addr %s829, 64
          %s831 = scalar_lea.vmem [#allocation3], %s830
          %832 = dma.done %s828, 1024
        $region56: #{tpu_custom_call.1} parent=51 // pred_fallthru
          _
      $region52: #{tpu_custom_call.1} parent=5 // pred_fallthru
        _
    $region6: #{tpu_custom_call.1} parent=1 // loop_footer
      %s18 = sadd.s32 1, %s14
    $region7: #{tpu_custom_call.1} parent=1 // loop_footer_branch
      %13 = sbr.rel target = $region3
    $region8: #{tpu_custom_call.1} parent=1 // loop_exit
      _
    %833 = vsyncpa [#allocation4], 1
    %s834 = scalar_lea.sflag [#allocation4], 1
    %835 = vsyncpa %s834, 1

</llo_original>
